<compile_context>
chip_gen: v7x
topology: tpu7x:2x2x1
jax: 0.10.0
libtpu: 0.0.40
codegen_flags: <defaults>
</compile_context>

<pallas_src>
import functools

import jax
import jax.numpy as jnp
import numpy as np
from jax.experimental import pallas as pl
from jax.experimental.pallas import tpu as pltpu


def _round_up(x, m):
    return ((x + m - 1) // m) * m


# --------------------------- weight packing (one-time) ---------------------------

def pack_encoder_params(emb_weight, w_ih, w_hh, b_ih, b_hh, H, Hp):
    """PyTorch GRU layout (gate order [r|z|n]) -> kernel-ready packed params.

    Returns:
      gi_table: (V, 3Hp) bf16 = emb @ W_ih^T + b_ih, with b_hh folded into the
                r/z gate lanes (their bias adds are hoisted out of the recurrence).
      whh_p:    (Hp, 3Hp) bf16 padded W_hh^T (resident MXU operand).
      bhhn_p:   (1, Hp)  f32 n-gate slice of b_hh (multiplied by r -> can't fold).
    Padded gate lanes are exactly zero.
    """
    V, _ = emb_weight.shape
    emb = jnp.asarray(emb_weight, jnp.float32)
    w_ih = jnp.asarray(w_ih, jnp.float32)
    w_hh = jnp.asarray(w_hh, jnp.float32)
    b_ih = jnp.asarray(b_ih, jnp.float32)
    b_hh = jnp.asarray(b_hh, jnp.float32)

    # Input projection folded into the embedding (dropout is identity in eval).
    gi = emb @ w_ih.T + b_ih                         # (V, 3H) exact f32
    gi = gi.at[:, :2 * H].add(b_hh[:2 * H])          # fold b_hh r/z lanes
    gi3 = gi.reshape(V, 3, H)
    gi_p = jnp.zeros((V, 3, Hp), jnp.float32).at[:, :, :H].set(gi3)
    gi_table = gi_p.reshape(V, 3 * Hp).astype(jnp.bfloat16)

    w3 = w_hh.reshape(3, H, H)
    wp = jnp.zeros((3, Hp, Hp), jnp.float32).at[:, :H, :H].set(w3)
    whh_p = wp.reshape(3 * Hp, Hp).T.astype(jnp.bfloat16)        # (Hp, 3Hp)

    bhhn_p = jnp.zeros((1, Hp), jnp.float32).at[0, :H].set(b_hh[2 * H:])
    return gi_table, whh_p, bhhn_p


# ------------------------------- Pallas GRU kernel -------------------------------

def _gru_kernel(gi_ref, whh_ref, bhhn_ref, out_ref, h_ref, *, Tt, Hp):
    tb = pl.program_id(1)                    # time-block index (serial axis)

    @pl.when(tb == 0)
    def _init():                             # new batch tile -> h0 = 0
        h_ref[...] = jnp.zeros_like(h_ref)

    whh = whh_ref[...]                       # (Hp, 3Hp) bf16, resident
    bhh_n = bhhn_ref[...]                    # (1, Hp)   f32 (only per-step bias)

    def step(t, h):
        # gi already contains W_ih x + b_ih (+ b_hh on r/z lanes); lane-dense load.
        gi_t = gi_ref[t].astype(jnp.float32)                       # (TB, 3Hp)
        gh = jnp.dot(h.astype(whh.dtype), whh,                     # 1 MXU op / step
                     preferred_element_type=jnp.float32)           # (TB, 3Hp)
        # Each gate occupies a full 128-lane group -> lane-aligned slices.
        r = jax.nn.sigmoid(gi_t[:, :Hp] + gh[:, :Hp])
        z = jax.nn.sigmoid(gi_t[:, Hp:2 * Hp] + gh[:, Hp:2 * Hp])
        n = jnp.tanh(gi_t[:, 2 * Hp:] + r * (gh[:, 2 * Hp:] + bhh_n))
        h_new = (1.0 - z) * n + z * h                              # f32 gate math
        out_ref[t] = h_new.astype(out_ref.dtype)                   # dense (TB,Hp) store
        return h_new

    h_ref[...] = jax.lax.fori_loop(0, Tt, step, h_ref[...], unroll=True)


def gru_encode(src, packed, *, H, Hp, batch_tile=128, time_block=32):
    """src: (B, T) int token ids. Returns outputs (B, T, H) f32, hidden (1, B, H) f32."""
    gi_table, whh_p, bhhn_p = packed
    B, T = src.shape

    # NOTE: batch_tile=128 fills the MXU M dim on v5e and is a safe default on
    # v6e/v7x; on v7x pick it so Bp/TB >= 2 to keep both TensorCores busy.
    TB = min(batch_tile, _round_up(B, 8))
    Tt = min(time_block, T)
    Bp = _round_up(B, TB)
    Tp = _round_up(T, Tt)
    nb, nt = Bp // TB, Tp // Tt

    src_p = jnp.zeros((Bp, Tp), jnp.int32).at[:B, :T].set(src.astype(jnp.int32))
    # Gather the precomputed input-gate rows, time-major: (Tp, Bp, 3Hp) bf16.
    gi_all = gi_table[src_p.T]

    # VMEM budget: double-buffered gi/out blocks + resident weights + h scratch.
    est = (2 * Tt * TB * 3 * Hp * 2 + 2 * Tt * TB * Hp * 4
           + 2 * Hp * 3 * Hp * 2 + TB * Hp * 4 + (1 << 20))
    vmem_limit = int(min(max(est, 16 * 1024 * 1024), 56 * 1024 * 1024))

    kernel = functools.partial(_gru_kernel, Tt=Tt, Hp=Hp)

    out_pad = pl.pallas_call(
        kernel,
        out_shape=jax.ShapeDtypeStruct((Tp, Bp, Hp), jnp.float32),
        grid_spec=pltpu.PrefetchScalarGridSpec(
            num_scalar_prefetch=0,
            grid=(nb, nt),                                     # (batch tiles, time blocks)
            in_specs=[
                pl.BlockSpec((Tt, TB, 3 * Hp), lambda b, t: (t, b, 0)),  # gi block
                pl.BlockSpec((Hp, 3 * Hp), lambda b, t: (0, 0)),         # W_hh^T (resident)
                pl.BlockSpec((1, Hp), lambda b, t: (0, 0)),              # b_hh n-gate
            ],
            out_specs=pl.BlockSpec((Tt, TB, Hp), lambda b, t: (t, b, 0)),
            scratch_shapes=[pltpu.VMEM((TB, Hp), jnp.float32)],          # carried hidden
        ),
        compiler_params=pltpu.CompilerParams(
            dimension_semantics=("parallel", "arbitrary"),
            vmem_limit_bytes=vmem_limit),
    )(gi_all, whh_p, bhhn_p)

    outputs = jnp.transpose(out_pad[:T, :B, :H], (1, 0, 2))     # (B, T, H)
    hidden = out_pad[T - 1, :B, :H][None]                       # (num_layers=1, B, H)
    return outputs, hidden


# --------------------------------- Encoder wrapper ---------------------------------

class EncoderPallas:
    def __init__(self, input_dim, embed_size, hidden_size, num_layers=1,
                 dropout=0.5, key=None, lane=128, batch_tile=128, time_block=32):
        assert num_layers == 1, "kernel implements the default single GRU layer"
        self.hidden_size = hidden_size
        self.batch_tile = batch_tile
        self.time_block = time_block

        key = jax.random.PRNGKey(0) if key is None else key
        k_emb, k1, k2, k3, k4 = jax.random.split(key, 5)
        bound = 1.0 / np.sqrt(hidden_size)
        # nn.Embedding default init: N(0, 1)
        self.emb_weight = jax.random.normal(k_emb, (input_dim, embed_size), jnp.float32)
        # nn.GRU default init: U(-1/sqrt(H), 1/sqrt(H)); gate order [r | z | n]
        self.w_ih = jax.random.uniform(k1, (3 * hidden_size, embed_size), jnp.float32, -bound, bound)
        self.w_hh = jax.random.uniform(k2, (3 * hidden_size, hidden_size), jnp.float32, -bound, bound)
        self.b_ih = jax.random.uniform(k3, (3 * hidden_size,), jnp.float32, -bound, bound)
        self.b_hh = jax.random.uniform(k4, (3 * hidden_size,), jnp.float32, -bound, bound)

        self.Hp = max(lane, _round_up(hidden_size, lane))
        # one-time packing: embedding+input-projection table, padded W_hh^T, n-gate bias
        self.packed = pack_encoder_params(self.emb_weight, self.w_ih, self.w_hh,
                                          self.b_ih, self.b_hh, hidden_size, self.Hp)

    def __call__(self, src):
        # src: (B, T) int token ids ; dropout: eval mode -> identity
        return gru_encode(src, self.packed, H=self.hidden_size, Hp=self.Hp,
                          batch_tile=self.batch_tile, time_block=self.time_block)


# ------------------------------ pure-JAX references ------------------------------

def gru_reference_f32(x_bte, w_ih, w_hh, b_ih, b_hh, H):
    """Exact f32 GRU (PyTorch semantics, batch_first inputs)."""
    def step(h, x_t):
        gi = x_t @ w_ih.T + b_ih
        gh = h @ w_hh.T + b_hh
        r = jax.nn.sigmoid(gi[:, :H] + gh[:, :H])
        z = jax.nn.sigmoid(gi[:, H:2 * H] + gh[:, H:2 * H])
        n = jnp.tanh(gi[:, 2 * H:] + r * gh[:, 2 * H:])
        h_new = (1.0 - z) * n + z * h
        return h_new, h_new
    B = x_bte.shape[0]
    h0 = jnp.zeros((B, H), jnp.float32)
    h_last, outs = jax.lax.scan(step, h0, jnp.transpose(x_bte, (1, 0, 2)))
    return jnp.transpose(outs, (1, 0, 2)), h_last[None]


def gru_reference_matched(src, packed, H, Hp):
    """Matches the kernel numerics: bf16 gi table + bf16 W_hh operands,
    f32 accumulation, f32 hidden carry and elementwise gate math."""
    gi_table, whh_p, bhhn_p = packed
    gi_tab = gi_table.reshape(-1, 3, Hp)[:, :, :H].reshape(-1, 3 * H).astype(jnp.float32)
    gi_all = gi_tab[src]                                         # (B, T, 3H) f32
    whh = whh_p.reshape(Hp, 3, Hp)[:H, :, :H].reshape(H, 3 * H)  # (H, 3H) bf16
    bhh_n = bhhn_p[0, :H]

    def step(h, gi_t):
        gh = jnp.dot(h.astype(jnp.bfloat16), whh, preferred_element_type=jnp.float32)
        r = jax.nn.sigmoid(gi_t[:, :H] + gh[:, :H])
        z = jax.nn.sigmoid(gi_t[:, H:2 * H] + gh[:, H:2 * H])
        n = jnp.tanh(gi_t[:, 2 * H:] + r * (gh[:, 2 * H:] + bhh_n))
        h_new = (1.0 - z) * n + z * h
        return h_new, h_new

    B = src.shape[0]
    h0 = jnp.zeros((B, H), jnp.float32)
    h_last, outs = jax.lax.scan(step, h0, jnp.transpose(gi_all, (1, 0, 2)))
    return jnp.transpose(outs, (1, 0, 2)), h_last[None]


# ---------------------------------------- main ----------------------------------------

if __name__ == "__main__":
    input_dim, embed_size, hidden_size = 50, 32, 32
    B, T = 2, 8

    key = jax.random.PRNGKey(0)
    enc = EncoderPallas(input_dim, embed_size, hidden_size, num_layers=1, key=key)

    src = jax.random.randint(jax.random.PRNGKey(0), (B, T), 0, input_dim, dtype=jnp.int32)

    outputs, hidden = enc(src)
    outputs, hidden = jax.block_until_ready((outputs, hidden))

    assert outputs.shape == (B, T, hidden_size)
    assert hidden.shape == (1, B, hidden_size)

    # sanity check vs exact-f32 reference (loose tol covers bf16 table/matmul operands)
    emb = enc.emb_weight[src]
    ref_out32, ref_hid32 = gru_reference_f32(emb, enc.w_ih, enc.w_hh, enc.b_ih, enc.b_hh,
                                             hidden_size)
    np.testing.assert_allclose(np.asarray(outputs), np.asarray(ref_out32), atol=3e-2, rtol=3e-2)
    np.testing.assert_allclose(np.asarray(hidden), np.asarray(ref_hid32), atol=3e-2, rtol=3e-2)

    # tight check vs matched-precision reference (bf16 operands, f32 accum/carry)
    ref_out, ref_hid = gru_reference_matched(src, enc.packed, hidden_size, enc.Hp)
    np.testing.assert_allclose(np.asarray(outputs), np.asarray(ref_out), atol=2e-3, rtol=2e-3)
    np.testing.assert_allclose(np.asarray(hidden), np.asarray(ref_hid), atol=2e-3, rtol=2e-3)

    print("KERNEL_OK")
</pallas_src>

<mosaic_0001>
module attributes {stable_mosaic.version = 11 : i64} {
  func.func @_gru_kernel(%arg0: i32, %arg1: i32, %arg2: memref<8x8x384xbf16, #tpu.memory_space<vmem>>, %arg3: memref<128x384xbf16, #tpu.memory_space<vmem>>, %arg4: memref<1x128xf32, #tpu.memory_space<vmem>>, %arg5: memref<8x8x128xf32, #tpu.memory_space<vmem>>, %arg6: memref<8x128xf32, #tpu.memory_space<vmem>>) attributes {dimension_semantics = [#tpu.dimension_semantics<parallel>, #tpu.dimension_semantics<arbitrary>], iteration_bounds = array<i64: 1, 1>, scalar_prefetch = 0 : i64, scratch_operands = 1 : i64, tpu.core_type = #tpu.core_type<tc>, window_params = [{transform_indices = @transform_0, window_bounds = array<i64: 8, 8, 384>}, {pipeline_mode = #tpu.pipeline_mode<synchronous>, transform_indices = @transform_1, window_bounds = array<i64: 128, 384>}, {pipeline_mode = #tpu.pipeline_mode<synchronous>, transform_indices = @transform_2, window_bounds = array<i64: 1, 128>}, {transform_indices = @transform_3, window_bounds = array<i64: 8, 8, 128>}]} {
    %c0_i32 = arith.constant 0 : i32
    %0 = arith.cmpi eq, %arg1, %c0_i32 : i32
    %1 = arith.extui %0 : i1 to i32
    %c0_i32_0 = arith.constant 0 : i32
    %2 = arith.cmpi ne, %1, %c0_i32_0 : i32
    scf.if %2 {
      %cst_72 = arith.constant 0.000000e+00 : f32
      %311 = vector.broadcast %cst_72 : f32 to vector<8x128xf32>
      %c0_73 = arith.constant 0 : index
      %c0_74 = arith.constant 0 : index
      %312 = vector.load %arg6[%c0_73, %c0_74] : memref<8x128xf32, #tpu.memory_space<vmem>>, vector<8x128xf32>
      tpu.vector_store %arg6[%c0_73, %c0_74], %311 {strides = array<i32>} : memref<8x128xf32, #tpu.memory_space<vmem>>, vector<8x128xf32>,
    } else {
    }
    %c0 = arith.constant 0 : index
    %c0_1 = arith.constant 0 : index
    %3 = vector.load %arg3[%c0, %c0_1] : memref<128x384xbf16, #tpu.memory_space<vmem>>, vector<128x384xbf16>
    %c0_2 = arith.constant 0 : index
    %c0_3 = arith.constant 0 : index
    %4 = vector.load %arg4[%c0_2, %c0_3] : memref<1x128xf32, #tpu.memory_space<vmem>>, vector<1x128xf32>
    %c0_4 = arith.constant 0 : index
    %c0_5 = arith.constant 0 : index
    %5 = vector.load %arg6[%c0_4, %c0_5] : memref<8x128xf32, #tpu.memory_space<vmem>>, vector<8x128xf32>
    %c0_i32_6 = arith.constant 0 : i32
    %6 = arith.index_cast %c0_i32_6 : i32 to index
    %c0_7 = arith.constant 0 : index
    %c0_8 = arith.constant 0 : index
    %7 = vector.load %arg2[%6, %c0_7, %c0_8] : memref<8x8x384xbf16, #tpu.memory_space<vmem>>, vector<1x8x384xbf16>
    %8 = vector.shape_cast %7 : vector<1x8x384xbf16> to vector<8x384xbf16>
    %9 = arith.extf %8 : vector<8x384xbf16> to vector<8x384xf32>
    %10 = arith.truncf %5 : vector<8x128xf32> to vector<8x128xbf16>
    %cst = arith.constant dense<0.000000e+00> : vector<8x384xf32>
    %11 = tpu.matmul %10, %3, %cst {dimension_numbers = #tpu.dot_dimension_numbers<[1], [0], [0], [1], [0, 0, 1, 1], [], []>} : vector<8x128xbf16>, vector<128x384xbf16>, vector<8x384xf32> -> vector<8x384xf32>
    %12 = vector.extract_strided_slice %9 {offsets = [0, 0], sizes = [8, 128], strides = [1, 1]} : vector<8x384xf32> to vector<8x128xf32>
    %13 = vector.extract_strided_slice %11 {offsets = [0, 0], sizes = [8, 128], strides = [1, 1]} : vector<8x384xf32> to vector<8x128xf32>
    %14 = arith.addf %12, %13 : vector<8x128xf32>
    %15 = arith.negf %14 : vector<8x128xf32>
    %16 = math.exp %15 : vector<8x128xf32>
    %cst_9 = arith.constant 1.000000e+00 : f32
    %17 = vector.broadcast %cst_9 : f32 to vector<8x128xf32>
    %18 = arith.addf %17, %16 : vector<8x128xf32>
    %19 = arith.divf %17, %18 : vector<8x128xf32>
    %20 = vector.extract_strided_slice %9 {offsets = [0, 128], sizes = [8, 128], strides = [1, 1]} : vector<8x384xf32> to vector<8x128xf32>
    %21 = vector.extract_strided_slice %11 {offsets = [0, 128], sizes = [8, 128], strides = [1, 1]} : vector<8x384xf32> to vector<8x128xf32>
    %22 = arith.addf %20, %21 : vector<8x128xf32>
    %23 = arith.negf %22 : vector<8x128xf32>
    %24 = math.exp %23 : vector<8x128xf32>
    %cst_10 = arith.constant 1.000000e+00 : f32
    %25 = vector.broadcast %cst_10 : f32 to vector<8x128xf32>
    %26 = arith.addf %25, %24 : vector<8x128xf32>
    %27 = arith.divf %25, %26 : vector<8x128xf32>
    %28 = vector.extract_strided_slice %9 {offsets = [0, 256], sizes = [8, 128], strides = [1, 1]} : vector<8x384xf32> to vector<8x128xf32>
    %29 = vector.extract_strided_slice %11 {offsets = [0, 256], sizes = [8, 128], strides = [1, 1]} : vector<8x384xf32> to vector<8x128xf32>
    %30 = vector.broadcast %4 : vector<1x128xf32> to vector<8x128xf32>
    %31 = arith.addf %29, %30 : vector<8x128xf32>
    %32 = arith.mulf %19, %31 : vector<8x128xf32>
    %33 = arith.addf %28, %32 : vector<8x128xf32>
    %34 = math.tanh %33 : vector<8x128xf32>
    %cst_11 = arith.constant 1.000000e+00 : f32
    %35 = vector.broadcast %cst_11 : f32 to vector<8x128xf32>
    %36 = arith.subf %35, %27 : vector<8x128xf32>
    %37 = arith.mulf %36, %34 : vector<8x128xf32>
    %38 = arith.mulf %27, %5 : vector<8x128xf32>
    %39 = arith.addf %37, %38 : vector<8x128xf32>
    %40 = arith.index_cast %c0_i32_6 : i32 to index
    %c0_12 = arith.constant 0 : index
    %c0_13 = arith.constant 0 : index
    %41 = vector.load %arg5[%40, %c0_12, %c0_13] : memref<8x8x128xf32, #tpu.memory_space<vmem>>, vector<1x8x128xf32>
    %42 = vector.shape_cast %41 : vector<1x8x128xf32> to vector<8x128xf32>
    %43 = vector.shape_cast %39 : vector<8x128xf32> to vector<1x8x128xf32>
    tpu.vector_store %arg5[%40, %c0_12, %c0_13], %43 {strides = array<i32>} : memref<8x8x128xf32, #tpu.memory_space<vmem>>, vector<1x8x128xf32>,
    %c1_i32 = arith.constant 1 : i32
    %44 = arith.index_cast %c1_i32 : i32 to index
    %c0_14 = arith.constant 0 : index
    %c0_15 = arith.constant 0 : index
    %45 = vector.load %arg2[%44, %c0_14, %c0_15] : memref<8x8x384xbf16, #tpu.memory_space<vmem>>, vector<1x8x384xbf16>
    %46 = vector.shape_cast %45 : vector<1x8x384xbf16> to vector<8x384xbf16>
    %47 = arith.extf %46 : vector<8x384xbf16> to vector<8x384xf32>
    %48 = arith.truncf %39 : vector<8x128xf32> to vector<8x128xbf16>
    %cst_16 = arith.constant dense<0.000000e+00> : vector<8x384xf32>
    %49 = tpu.matmul %48, %3, %cst_16 {dimension_numbers = #tpu.dot_dimension_numbers<[1], [0], [0], [1], [0, 0, 1, 1], [], []>} : vector<8x128xbf16>, vector<128x384xbf16>, vector<8x384xf32> -> vector<8x384xf32>
    %50 = vector.extract_strided_slice %47 {offsets = [0, 0], sizes = [8, 128], strides = [1, 1]} : vector<8x384xf32> to vector<8x128xf32>
    %51 = vector.extract_strided_slice %49 {offsets = [0, 0], sizes = [8, 128], strides = [1, 1]} : vector<8x384xf32> to vector<8x128xf32>
    %52 = arith.addf %50, %51 : vector<8x128xf32>
    %53 = arith.negf %52 : vector<8x128xf32>
    %54 = math.exp %53 : vector<8x128xf32>
    %cst_17 = arith.constant 1.000000e+00 : f32
    %55 = vector.broadcast %cst_17 : f32 to vector<8x128xf32>
    %56 = arith.addf %55, %54 : vector<8x128xf32>
    %57 = arith.divf %55, %56 : vector<8x128xf32>
    %58 = vector.extract_strided_slice %47 {offsets = [0, 128], sizes = [8, 128], strides = [1, 1]} : vector<8x384xf32> to vector<8x128xf32>
    %59 = vector.extract_strided_slice %49 {offsets = [0, 128], sizes = [8, 128], strides = [1, 1]} : vector<8x384xf32> to vector<8x128xf32>
    %60 = arith.addf %58, %59 : vector<8x128xf32>
    %61 = arith.negf %60 : vector<8x128xf32>
    %62 = math.exp %61 : vector<8x128xf32>
    %cst_18 = arith.constant 1.000000e+00 : f32
    %63 = vector.broadcast %cst_18 : f32 to vector<8x128xf32>
    %64 = arith.addf %63, %62 : vector<8x128xf32>
    %65 = arith.divf %63, %64 : vector<8x128xf32>
    %66 = vector.extract_strided_slice %47 {offsets = [0, 256], sizes = [8, 128], strides = [1, 1]} : vector<8x384xf32> to vector<8x128xf32>
    %67 = vector.extract_strided_slice %49 {offsets = [0, 256], sizes = [8, 128], strides = [1, 1]} : vector<8x384xf32> to vector<8x128xf32>
    %68 = vector.broadcast %4 : vector<1x128xf32> to vector<8x128xf32>
    %69 = arith.addf %67, %68 : vector<8x128xf32>
    %70 = arith.mulf %57, %69 : vector<8x128xf32>
    %71 = arith.addf %66, %70 : vector<8x128xf32>
    %72 = math.tanh %71 : vector<8x128xf32>
    %cst_19 = arith.constant 1.000000e+00 : f32
    %73 = vector.broadcast %cst_19 : f32 to vector<8x128xf32>
    %74 = arith.subf %73, %65 : vector<8x128xf32>
    %75 = arith.mulf %74, %72 : vector<8x128xf32>
    %76 = arith.mulf %65, %39 : vector<8x128xf32>
    %77 = arith.addf %75, %76 : vector<8x128xf32>
    %78 = arith.index_cast %c1_i32 : i32 to index
    %c0_20 = arith.constant 0 : index
    %c0_21 = arith.constant 0 : index
    %79 = vector.load %arg5[%78, %c0_20, %c0_21] : memref<8x8x128xf32, #tpu.memory_space<vmem>>, vector<1x8x128xf32>
    %80 = vector.shape_cast %79 : vector<1x8x128xf32> to vector<8x128xf32>
    %81 = vector.shape_cast %77 : vector<8x128xf32> to vector<1x8x128xf32>
    tpu.vector_store %arg5[%78, %c0_20, %c0_21], %81 {strides = array<i32>} : memref<8x8x128xf32, #tpu.memory_space<vmem>>, vector<1x8x128xf32>,
    %c2_i32 = arith.constant 2 : i32
    %82 = arith.index_cast %c2_i32 : i32 to index
    %c0_22 = arith.constant 0 : index
    %c0_23 = arith.constant 0 : index
    %83 = vector.load %arg2[%82, %c0_22, %c0_23] : memref<8x8x384xbf16, #tpu.memory_space<vmem>>, vector<1x8x384xbf16>
    %84 = vector.shape_cast %83 : vector<1x8x384xbf16> to vector<8x384xbf16>
    %85 = arith.extf %84 : vector<8x384xbf16> to vector<8x384xf32>
    %86 = arith.truncf %77 : vector<8x128xf32> to vector<8x128xbf16>
    %cst_24 = arith.constant dense<0.000000e+00> : vector<8x384xf32>
    %87 = tpu.matmul %86, %3, %cst_24 {dimension_numbers = #tpu.dot_dimension_numbers<[1], [0], [0], [1], [0, 0, 1, 1], [], []>} : vector<8x128xbf16>, vector<128x384xbf16>, vector<8x384xf32> -> vector<8x384xf32>
    %88 = vector.extract_strided_slice %85 {offsets = [0, 0], sizes = [8, 128], strides = [1, 1]} : vector<8x384xf32> to vector<8x128xf32>
    %89 = vector.extract_strided_slice %87 {offsets = [0, 0], sizes = [8, 128], strides = [1, 1]} : vector<8x384xf32> to vector<8x128xf32>
    %90 = arith.addf %88, %89 : vector<8x128xf32>
    %91 = arith.negf %90 : vector<8x128xf32>
    %92 = math.exp %91 : vector<8x128xf32>
    %cst_25 = arith.constant 1.000000e+00 : f32
    %93 = vector.broadcast %cst_25 : f32 to vector<8x128xf32>
    %94 = arith.addf %93, %92 : vector<8x128xf32>
    %95 = arith.divf %93, %94 : vector<8x128xf32>
    %96 = vector.extract_strided_slice %85 {offsets = [0, 128], sizes = [8, 128], strides = [1, 1]} : vector<8x384xf32> to vector<8x128xf32>
    %97 = vector.extract_strided_slice %87 {offsets = [0, 128], sizes = [8, 128], strides = [1, 1]} : vector<8x384xf32> to vector<8x128xf32>
    %98 = arith.addf %96, %97 : vector<8x128xf32>
    %99 = arith.negf %98 : vector<8x128xf32>
    %100 = math.exp %99 : vector<8x128xf32>
    %cst_26 = arith.constant 1.000000e+00 : f32
    %101 = vector.broadcast %cst_26 : f32 to vector<8x128xf32>
    %102 = arith.addf %101, %100 : vector<8x128xf32>
    %103 = arith.divf %101, %102 : vector<8x128xf32>
    %104 = vector.extract_strided_slice %85 {offsets = [0, 256], sizes = [8, 128], strides = [1, 1]} : vector<8x384xf32> to vector<8x128xf32>
    %105 = vector.extract_strided_slice %87 {offsets = [0, 256], sizes = [8, 128], strides = [1, 1]} : vector<8x384xf32> to vector<8x128xf32>
    %106 = vector.broadcast %4 : vector<1x128xf32> to vector<8x128xf32>
    %107 = arith.addf %105, %106 : vector<8x128xf32>
    %108 = arith.mulf %95, %107 : vector<8x128xf32>
    %109 = arith.addf %104, %108 : vector<8x128xf32>
    %110 = math.tanh %109 : vector<8x128xf32>
    %cst_27 = arith.constant 1.000000e+00 : f32
    %111 = vector.broadcast %cst_27 : f32 to vector<8x128xf32>
    %112 = arith.subf %111, %103 : vector<8x128xf32>
    %113 = arith.mulf %112, %110 : vector<8x128xf32>
    %114 = arith.mulf %103, %77 : vector<8x128xf32>
    %115 = arith.addf %113, %114 : vector<8x128xf32>
    %116 = arith.index_cast %c2_i32 : i32 to index
    %c0_28 = arith.constant 0 : index
    %c0_29 = arith.constant 0 : index
    %117 = vector.load %arg5[%116, %c0_28, %c0_29] : memref<8x8x128xf32, #tpu.memory_space<vmem>>, vector<1x8x128xf32>
    %118 = vector.shape_cast %117 : vector<1x8x128xf32> to vector<8x128xf32>
    %119 = vector.shape_cast %115 : vector<8x128xf32> to vector<1x8x128xf32>
    tpu.vector_store %arg5[%116, %c0_28, %c0_29], %119 {strides = array<i32>} : memref<8x8x128xf32, #tpu.memory_space<vmem>>, vector<1x8x128xf32>,
    %c3_i32 = arith.constant 3 : i32
    %120 = arith.index_cast %c3_i32 : i32 to index
    %c0_30 = arith.constant 0 : index
    %c0_31 = arith.constant 0 : index
    %121 = vector.load %arg2[%120, %c0_30, %c0_31] : memref<8x8x384xbf16, #tpu.memory_space<vmem>>, vector<1x8x384xbf16>
    %122 = vector.shape_cast %121 : vector<1x8x384xbf16> to vector<8x384xbf16>
    %123 = arith.extf %122 : vector<8x384xbf16> to vector<8x384xf32>
    %124 = arith.truncf %115 : vector<8x128xf32> to vector<8x128xbf16>
    %cst_32 = arith.constant dense<0.000000e+00> : vector<8x384xf32>
    %125 = tpu.matmul %124, %3, %cst_32 {dimension_numbers = #tpu.dot_dimension_numbers<[1], [0], [0], [1], [0, 0, 1, 1], [], []>} : vector<8x128xbf16>, vector<128x384xbf16>, vector<8x384xf32> -> vector<8x384xf32>
    %126 = vector.extract_strided_slice %123 {offsets = [0, 0], sizes = [8, 128], strides = [1, 1]} : vector<8x384xf32> to vector<8x128xf32>
    %127 = vector.extract_strided_slice %125 {offsets = [0, 0], sizes = [8, 128], strides = [1, 1]} : vector<8x384xf32> to vector<8x128xf32>
    %128 = arith.addf %126, %127 : vector<8x128xf32>
    %129 = arith.negf %128 : vector<8x128xf32>
    %130 = math.exp %129 : vector<8x128xf32>
    %cst_33 = arith.constant 1.000000e+00 : f32
    %131 = vector.broadcast %cst_33 : f32 to vector<8x128xf32>
    %132 = arith.addf %131, %130 : vector<8x128xf32>
    %133 = arith.divf %131, %132 : vector<8x128xf32>
    %134 = vector.extract_strided_slice %123 {offsets = [0, 128], sizes = [8, 128], strides = [1, 1]} : vector<8x384xf32> to vector<8x128xf32>
    %135 = vector.extract_strided_slice %125 {offsets = [0, 128], sizes = [8, 128], strides = [1, 1]} : vector<8x384xf32> to vector<8x128xf32>
    %136 = arith.addf %134, %135 : vector<8x128xf32>
    %137 = arith.negf %136 : vector<8x128xf32>
    %138 = math.exp %137 : vector<8x128xf32>
    %cst_34 = arith.constant 1.000000e+00 : f32
    %139 = vector.broadcast %cst_34 : f32 to vector<8x128xf32>
    %140 = arith.addf %139, %138 : vector<8x128xf32>
    %141 = arith.divf %139, %140 : vector<8x128xf32>
    %142 = vector.extract_strided_slice %123 {offsets = [0, 256], sizes = [8, 128], strides = [1, 1]} : vector<8x384xf32> to vector<8x128xf32>
    %143 = vector.extract_strided_slice %125 {offsets = [0, 256], sizes = [8, 128], strides = [1, 1]} : vector<8x384xf32> to vector<8x128xf32>
    %144 = vector.broadcast %4 : vector<1x128xf32> to vector<8x128xf32>
    %145 = arith.addf %143, %144 : vector<8x128xf32>
    %146 = arith.mulf %133, %145 : vector<8x128xf32>
    %147 = arith.addf %142, %146 : vector<8x128xf32>
    %148 = math.tanh %147 : vector<8x128xf32>
    %cst_35 = arith.constant 1.000000e+00 : f32
    %149 = vector.broadcast %cst_35 : f32 to vector<8x128xf32>
    %150 = arith.subf %149, %141 : vector<8x128xf32>
    %151 = arith.mulf %150, %148 : vector<8x128xf32>
    %152 = arith.mulf %141, %115 : vector<8x128xf32>
    %153 = arith.addf %151, %152 : vector<8x128xf32>
    %154 = arith.index_cast %c3_i32 : i32 to index
    %c0_36 = arith.constant 0 : index
    %c0_37 = arith.constant 0 : index
    %155 = vector.load %arg5[%154, %c0_36, %c0_37] : memref<8x8x128xf32, #tpu.memory_space<vmem>>, vector<1x8x128xf32>
    %156 = vector.shape_cast %155 : vector<1x8x128xf32> to vector<8x128xf32>
    %157 = vector.shape_cast %153 : vector<8x128xf32> to vector<1x8x128xf32>
    tpu.vector_store %arg5[%154, %c0_36, %c0_37], %157 {strides = array<i32>} : memref<8x8x128xf32, #tpu.memory_space<vmem>>, vector<1x8x128xf32>,
    %c4_i32 = arith.constant 4 : i32
    %158 = arith.index_cast %c4_i32 : i32 to index
    %c0_38 = arith.constant 0 : index
    %c0_39 = arith.constant 0 : index
    %159 = vector.load %arg2[%158, %c0_38, %c0_39] : memref<8x8x384xbf16, #tpu.memory_space<vmem>>, vector<1x8x384xbf16>
    %160 = vector.shape_cast %159 : vector<1x8x384xbf16> to vector<8x384xbf16>
    %161 = arith.extf %160 : vector<8x384xbf16> to vector<8x384xf32>
    %162 = arith.truncf %153 : vector<8x128xf32> to vector<8x128xbf16>
    %cst_40 = arith.constant dense<0.000000e+00> : vector<8x384xf32>
    %163 = tpu.matmul %162, %3, %cst_40 {dimension_numbers = #tpu.dot_dimension_numbers<[1], [0], [0], [1], [0, 0, 1, 1], [], []>} : vector<8x128xbf16>, vector<128x384xbf16>, vector<8x384xf32> -> vector<8x384xf32>
    %164 = vector.extract_strided_slice %161 {offsets = [0, 0], sizes = [8, 128], strides = [1, 1]} : vector<8x384xf32> to vector<8x128xf32>
    %165 = vector.extract_strided_slice %163 {offsets = [0, 0], sizes = [8, 128], strides = [1, 1]} : vector<8x384xf32> to vector<8x128xf32>
    %166 = arith.addf %164, %165 : vector<8x128xf32>
    %167 = arith.negf %166 : vector<8x128xf32>
    %168 = math.exp %167 : vector<8x128xf32>
    %cst_41 = arith.constant 1.000000e+00 : f32
    %169 = vector.broadcast %cst_41 : f32 to vector<8x128xf32>
    %170 = arith.addf %169, %168 : vector<8x128xf32>
    %171 = arith.divf %169, %170 : vector<8x128xf32>
    %172 = vector.extract_strided_slice %161 {offsets = [0, 128], sizes = [8, 128], strides = [1, 1]} : vector<8x384xf32> to vector<8x128xf32>
    %173 = vector.extract_strided_slice %163 {offsets = [0, 128], sizes = [8, 128], strides = [1, 1]} : vector<8x384xf32> to vector<8x128xf32>
    %174 = arith.addf %172, %173 : vector<8x128xf32>
    %175 = arith.negf %174 : vector<8x128xf32>
    %176 = math.exp %175 : vector<8x128xf32>
    %cst_42 = arith.constant 1.000000e+00 : f32
    %177 = vector.broadcast %cst_42 : f32 to vector<8x128xf32>
    %178 = arith.addf %177, %176 : vector<8x128xf32>
    %179 = arith.divf %177, %178 : vector<8x128xf32>
    %180 = vector.extract_strided_slice %161 {offsets = [0, 256], sizes = [8, 128], strides = [1, 1]} : vector<8x384xf32> to vector<8x128xf32>
    %181 = vector.extract_strided_slice %163 {offsets = [0, 256], sizes = [8, 128], strides = [1, 1]} : vector<8x384xf32> to vector<8x128xf32>
    %182 = vector.broadcast %4 : vector<1x128xf32> to vector<8x128xf32>
    %183 = arith.addf %181, %182 : vector<8x128xf32>
    %184 = arith.mulf %171, %183 : vector<8x128xf32>
    %185 = arith.addf %180, %184 : vector<8x128xf32>
    %186 = math.tanh %185 : vector<8x128xf32>
    %cst_43 = arith.constant 1.000000e+00 : f32
    %187 = vector.broadcast %cst_43 : f32 to vector<8x128xf32>
    %188 = arith.subf %187, %179 : vector<8x128xf32>
    %189 = arith.mulf %188, %186 : vector<8x128xf32>
    %190 = arith.mulf %179, %153 : vector<8x128xf32>
    %191 = arith.addf %189, %190 : vector<8x128xf32>
    %192 = arith.index_cast %c4_i32 : i32 to index
    %c0_44 = arith.constant 0 : index
    %c0_45 = arith.constant 0 : index
    %193 = vector.load %arg5[%192, %c0_44, %c0_45] : memref<8x8x128xf32, #tpu.memory_space<vmem>>, vector<1x8x128xf32>
    %194 = vector.shape_cast %193 : vector<1x8x128xf32> to vector<8x128xf32>
    %195 = vector.shape_cast %191 : vector<8x128xf32> to vector<1x8x128xf32>
    tpu.vector_store %arg5[%192, %c0_44, %c0_45], %195 {strides = array<i32>} : memref<8x8x128xf32, #tpu.memory_space<vmem>>, vector<1x8x128xf32>,
    %c5_i32 = arith.constant 5 : i32
    %196 = arith.index_cast %c5_i32 : i32 to index
    %c0_46 = arith.constant 0 : index
    %c0_47 = arith.constant 0 : index
    %197 = vector.load %arg2[%196, %c0_46, %c0_47] : memref<8x8x384xbf16, #tpu.memory_space<vmem>>, vector<1x8x384xbf16>
    %198 = vector.shape_cast %197 : vector<1x8x384xbf16> to vector<8x384xbf16>
    %199 = arith.extf %198 : vector<8x384xbf16> to vector<8x384xf32>
    %200 = arith.truncf %191 : vector<8x128xf32> to vector<8x128xbf16>
    %cst_48 = arith.constant dense<0.000000e+00> : vector<8x384xf32>
    %201 = tpu.matmul %200, %3, %cst_48 {dimension_numbers = #tpu.dot_dimension_numbers<[1], [0], [0], [1], [0, 0, 1, 1], [], []>} : vector<8x128xbf16>, vector<128x384xbf16>, vector<8x384xf32> -> vector<8x384xf32>
    %202 = vector.extract_strided_slice %199 {offsets = [0, 0], sizes = [8, 128], strides = [1, 1]} : vector<8x384xf32> to vector<8x128xf32>
    %203 = vector.extract_strided_slice %201 {offsets = [0, 0], sizes = [8, 128], strides = [1, 1]} : vector<8x384xf32> to vector<8x128xf32>
    %204 = arith.addf %202, %203 : vector<8x128xf32>
    %205 = arith.negf %204 : vector<8x128xf32>
    %206 = math.exp %205 : vector<8x128xf32>
    %cst_49 = arith.constant 1.000000e+00 : f32
    %207 = vector.broadcast %cst_49 : f32 to vector<8x128xf32>
    %208 = arith.addf %207, %206 : vector<8x128xf32>
    %209 = arith.divf %207, %208 : vector<8x128xf32>
    %210 = vector.extract_strided_slice %199 {offsets = [0, 128], sizes = [8, 128], strides = [1, 1]} : vector<8x384xf32> to vector<8x128xf32>
    %211 = vector.extract_strided_slice %201 {offsets = [0, 128], sizes = [8, 128], strides = [1, 1]} : vector<8x384xf32> to vector<8x128xf32>
    %212 = arith.addf %210, %211 : vector<8x128xf32>
    %213 = arith.negf %212 : vector<8x128xf32>
    %214 = math.exp %213 : vector<8x128xf32>
    %cst_50 = arith.constant 1.000000e+00 : f32
    %215 = vector.broadcast %cst_50 : f32 to vector<8x128xf32>
    %216 = arith.addf %215, %214 : vector<8x128xf32>
    %217 = arith.divf %215, %216 : vector<8x128xf32>
    %218 = vector.extract_strided_slice %199 {offsets = [0, 256], sizes = [8, 128], strides = [1, 1]} : vector<8x384xf32> to vector<8x128xf32>
    %219 = vector.extract_strided_slice %201 {offsets = [0, 256], sizes = [8, 128], strides = [1, 1]} : vector<8x384xf32> to vector<8x128xf32>
    %220 = vector.broadcast %4 : vector<1x128xf32> to vector<8x128xf32>
    %221 = arith.addf %219, %220 : vector<8x128xf32>
    %222 = arith.mulf %209, %221 : vector<8x128xf32>
    %223 = arith.addf %218, %222 : vector<8x128xf32>
    %224 = math.tanh %223 : vector<8x128xf32>
    %cst_51 = arith.constant 1.000000e+00 : f32
    %225 = vector.broadcast %cst_51 : f32 to vector<8x128xf32>
    %226 = arith.subf %225, %217 : vector<8x128xf32>
    %227 = arith.mulf %226, %224 : vector<8x128xf32>
    %228 = arith.mulf %217, %191 : vector<8x128xf32>
    %229 = arith.addf %227, %228 : vector<8x128xf32>
    %230 = arith.index_cast %c5_i32 : i32 to index
    %c0_52 = arith.constant 0 : index
    %c0_53 = arith.constant 0 : index
    %231 = vector.load %arg5[%230, %c0_52, %c0_53] : memref<8x8x128xf32, #tpu.memory_space<vmem>>, vector<1x8x128xf32>
    %232 = vector.shape_cast %231 : vector<1x8x128xf32> to vector<8x128xf32>
    %233 = vector.shape_cast %229 : vector<8x128xf32> to vector<1x8x128xf32>
    tpu.vector_store %arg5[%230, %c0_52, %c0_53], %233 {strides = array<i32>} : memref<8x8x128xf32, #tpu.memory_space<vmem>>, vector<1x8x128xf32>,
    %c6_i32 = arith.constant 6 : i32
    %234 = arith.index_cast %c6_i32 : i32 to index
    %c0_54 = arith.constant 0 : index
    %c0_55 = arith.constant 0 : index
    %235 = vector.load %arg2[%234, %c0_54, %c0_55] : memref<8x8x384xbf16, #tpu.memory_space<vmem>>, vector<1x8x384xbf16>
    %236 = vector.shape_cast %235 : vector<1x8x384xbf16> to vector<8x384xbf16>
    %237 = arith.extf %236 : vector<8x384xbf16> to vector<8x384xf32>
    %238 = arith.truncf %229 : vector<8x128xf32> to vector<8x128xbf16>
    %cst_56 = arith.constant dense<0.000000e+00> : vector<8x384xf32>
    %239 = tpu.matmul %238, %3, %cst_56 {dimension_numbers = #tpu.dot_dimension_numbers<[1], [0], [0], [1], [0, 0, 1, 1], [], []>} : vector<8x128xbf16>, vector<128x384xbf16>, vector<8x384xf32> -> vector<8x384xf32>
    %240 = vector.extract_strided_slice %237 {offsets = [0, 0], sizes = [8, 128], strides = [1, 1]} : vector<8x384xf32> to vector<8x128xf32>
    %241 = vector.extract_strided_slice %239 {offsets = [0, 0], sizes = [8, 128], strides = [1, 1]} : vector<8x384xf32> to vector<8x128xf32>
    %242 = arith.addf %240, %241 : vector<8x128xf32>
    %243 = arith.negf %242 : vector<8x128xf32>
    %244 = math.exp %243 : vector<8x128xf32>
    %cst_57 = arith.constant 1.000000e+00 : f32
    %245 = vector.broadcast %cst_57 : f32 to vector<8x128xf32>
    %246 = arith.addf %245, %244 : vector<8x128xf32>
    %247 = arith.divf %245, %246 : vector<8x128xf32>
    %248 = vector.extract_strided_slice %237 {offsets = [0, 128], sizes = [8, 128], strides = [1, 1]} : vector<8x384xf32> to vector<8x128xf32>
    %249 = vector.extract_strided_slice %239 {offsets = [0, 128], sizes = [8, 128], strides = [1, 1]} : vector<8x384xf32> to vector<8x128xf32>
    %250 = arith.addf %248, %249 : vector<8x128xf32>
    %251 = arith.negf %250 : vector<8x128xf32>
    %252 = math.exp %251 : vector<8x128xf32>
    %cst_58 = arith.constant 1.000000e+00 : f32
    %253 = vector.broadcast %cst_58 : f32 to vector<8x128xf32>
    %254 = arith.addf %253, %252 : vector<8x128xf32>
    %255 = arith.divf %253, %254 : vector<8x128xf32>
    %256 = vector.extract_strided_slice %237 {offsets = [0, 256], sizes = [8, 128], strides = [1, 1]} : vector<8x384xf32> to vector<8x128xf32>
    %257 = vector.extract_strided_slice %239 {offsets = [0, 256], sizes = [8, 128], strides = [1, 1]} : vector<8x384xf32> to vector<8x128xf32>
    %258 = vector.broadcast %4 : vector<1x128xf32> to vector<8x128xf32>
    %259 = arith.addf %257, %258 : vector<8x128xf32>
    %260 = arith.mulf %247, %259 : vector<8x128xf32>
    %261 = arith.addf %256, %260 : vector<8x128xf32>
    %262 = math.tanh %261 : vector<8x128xf32>
    %cst_59 = arith.constant 1.000000e+00 : f32
    %263 = vector.broadcast %cst_59 : f32 to vector<8x128xf32>
    %264 = arith.subf %263, %255 : vector<8x128xf32>
    %265 = arith.mulf %264, %262 : vector<8x128xf32>
    %266 = arith.mulf %255, %229 : vector<8x128xf32>
    %267 = arith.addf %265, %266 : vector<8x128xf32>
    %268 = arith.index_cast %c6_i32 : i32 to index
    %c0_60 = arith.constant 0 : index
    %c0_61 = arith.constant 0 : index
    %269 = vector.load %arg5[%268, %c0_60, %c0_61] : memref<8x8x128xf32, #tpu.memory_space<vmem>>, vector<1x8x128xf32>
    %270 = vector.shape_cast %269 : vector<1x8x128xf32> to vector<8x128xf32>
    %271 = vector.shape_cast %267 : vector<8x128xf32> to vector<1x8x128xf32>
    tpu.vector_store %arg5[%268, %c0_60, %c0_61], %271 {strides = array<i32>} : memref<8x8x128xf32, #tpu.memory_space<vmem>>, vector<1x8x128xf32>,
    %c7_i32 = arith.constant 7 : i32
    %272 = arith.index_cast %c7_i32 : i32 to index
    %c0_62 = arith.constant 0 : index
    %c0_63 = arith.constant 0 : index
    %273 = vector.load %arg2[%272, %c0_62, %c0_63] : memref<8x8x384xbf16, #tpu.memory_space<vmem>>, vector<1x8x384xbf16>
    %274 = vector.shape_cast %273 : vector<1x8x384xbf16> to vector<8x384xbf16>
    %275 = arith.extf %274 : vector<8x384xbf16> to vector<8x384xf32>
    %276 = arith.truncf %267 : vector<8x128xf32> to vector<8x128xbf16>
    %cst_64 = arith.constant dense<0.000000e+00> : vector<8x384xf32>
    %277 = tpu.matmul %276, %3, %cst_64 {dimension_numbers = #tpu.dot_dimension_numbers<[1], [0], [0], [1], [0, 0, 1, 1], [], []>} : vector<8x128xbf16>, vector<128x384xbf16>, vector<8x384xf32> -> vector<8x384xf32>
    %278 = vector.extract_strided_slice %275 {offsets = [0, 0], sizes = [8, 128], strides = [1, 1]} : vector<8x384xf32> to vector<8x128xf32>
    %279 = vector.extract_strided_slice %277 {offsets = [0, 0], sizes = [8, 128], strides = [1, 1]} : vector<8x384xf32> to vector<8x128xf32>
    %280 = arith.addf %278, %279 : vector<8x128xf32>
    %281 = arith.negf %280 : vector<8x128xf32>
    %282 = math.exp %281 : vector<8x128xf32>
    %cst_65 = arith.constant 1.000000e+00 : f32
    %283 = vector.broadcast %cst_65 : f32 to vector<8x128xf32>
    %284 = arith.addf %283, %282 : vector<8x128xf32>
    %285 = arith.divf %283, %284 : vector<8x128xf32>
    %286 = vector.extract_strided_slice %275 {offsets = [0, 128], sizes = [8, 128], strides = [1, 1]} : vector<8x384xf32> to vector<8x128xf32>
    %287 = vector.extract_strided_slice %277 {offsets = [0, 128], sizes = [8, 128], strides = [1, 1]} : vector<8x384xf32> to vector<8x128xf32>
    %288 = arith.addf %286, %287 : vector<8x128xf32>
    %289 = arith.negf %288 : vector<8x128xf32>
    %290 = math.exp %289 : vector<8x128xf32>
    %cst_66 = arith.constant 1.000000e+00 : f32
    %291 = vector.broadcast %cst_66 : f32 to vector<8x128xf32>
    %292 = arith.addf %291, %290 : vector<8x128xf32>
    %293 = arith.divf %291, %292 : vector<8x128xf32>
    %294 = vector.extract_strided_slice %275 {offsets = [0, 256], sizes = [8, 128], strides = [1, 1]} : vector<8x384xf32> to vector<8x128xf32>
    %295 = vector.extract_strided_slice %277 {offsets = [0, 256], sizes = [8, 128], strides = [1, 1]} : vector<8x384xf32> to vector<8x128xf32>
    %296 = vector.broadcast %4 : vector<1x128xf32> to vector<8x128xf32>
    %297 = arith.addf %295, %296 : vector<8x128xf32>
    %298 = arith.mulf %285, %297 : vector<8x128xf32>
    %299 = arith.addf %294, %298 : vector<8x128xf32>
    %300 = math.tanh %299 : vector<8x128xf32>
    %cst_67 = arith.constant 1.000000e+00 : f32
    %301 = vector.broadcast %cst_67 : f32 to vector<8x128xf32>
    %302 = arith.subf %301, %293 : vector<8x128xf32>
    %303 = arith.mulf %302, %300 : vector<8x128xf32>
    %304 = arith.mulf %293, %267 : vector<8x128xf32>
    %305 = arith.addf %303, %304 : vector<8x128xf32>
    %306 = arith.index_cast %c7_i32 : i32 to index
    %c0_68 = arith.constant 0 : index
    %c0_69 = arith.constant 0 : index
    %307 = vector.load %arg5[%306, %c0_68, %c0_69] : memref<8x8x128xf32, #tpu.memory_space<vmem>>, vector<1x8x128xf32>
    %308 = vector.shape_cast %307 : vector<1x8x128xf32> to vector<8x128xf32>
    %309 = vector.shape_cast %305 : vector<8x128xf32> to vector<1x8x128xf32>
    tpu.vector_store %arg5[%306, %c0_68, %c0_69], %309 {strides = array<i32>} : memref<8x8x128xf32, #tpu.memory_space<vmem>>, vector<1x8x128xf32>,
    %c8_i32 = arith.constant 8 : i32
    %c0_70 = arith.constant 0 : index
    %c0_71 = arith.constant 0 : index
    %310 = vector.load %arg6[%c0_70, %c0_71] : memref<8x128xf32, #tpu.memory_space<vmem>>, vector<8x128xf32>
    tpu.vector_store %arg6[%c0_70, %c0_71], %305 {strides = array<i32>} : memref<8x128xf32, #tpu.memory_space<vmem>>, vector<8x128xf32>,
    return
  }
  func.func @transform_0(%arg0: i32, %arg1: i32) -> (i32, i32, i32) {
    %c0_i32 = arith.constant 0 : i32
    %c0_i32_0 = arith.constant 0 : i32
    return %arg1, %arg0, %c0_i32 : i32, i32, i32
  }
  func.func @transform_1(%arg0: i32, %arg1: i32) -> (i32, i32) {
    %c0_i32 = arith.constant 0 : i32
    %c0_i32_0 = arith.constant 0 : i32
    %c0_i32_1 = arith.constant 0 : i32
    return %c0_i32, %c0_i32_0 : i32, i32
  }
  func.func @transform_2(%arg0: i32, %arg1: i32) -> (i32, i32) {
    %c0_i32 = arith.constant 0 : i32
    %c0_i32_0 = arith.constant 0 : i32
    %c0_i32_1 = arith.constant 0 : i32
    return %c0_i32, %c0_i32_0 : i32, i32
  }
  func.func @transform_3(%arg0: i32, %arg1: i32) -> (i32, i32, i32) {
    %c0_i32 = arith.constant 0 : i32
    %c0_i32_0 = arith.constant 0 : i32
    return %arg1, %arg0, %c0_i32 : i32, i32, i32
  }
}

</mosaic_0001>

<llo_original>
// kernel: tpu_custom_call.1
$region0: #{tpu_custom_call.1}
  #allocation0 [shape = 'u32[]', space=smem, size = 0x4, offset = 0x4, fixed_abs, tag = 'smem constant byte address 0x4 - core index']
  #allocation1 [shape = 'u32[144,128]{1,0:T(1,128)}', space=vmem, size = 0x12000, scoped, tag = 'internal scratch']
  #allocation2 [shape = 'f32[8,128]{1,0:T(8,128)}', space=vmem, size = 0x1000, scoped, tag = 'scratch operand']
  %s0 = inlined_call_operand.hbm [shape: bf16[8,8,384], index: 0, kind: input, shape index: {}]
  %s1 = inlined_call_operand.hbm [shape: bf16[128,384], index: 1, kind: input, shape index: {}]
  %s2 = inlined_call_operand.vmem [shape: f32[1,128], index: 2, kind: input, shape index: {}]
  %s3 = inlined_call_operand.hbm [shape: f32[8,8,128], index: 3, kind: output, shape index: {}]
  %s4 = sld [smem:[#allocation0]]
  $region34: #{tpu_custom_call.1} parent=0
    _
  %s6 = ssub.s32 1, %s4
  %s7 = scalar_select 0, %s6, %s4
  $region1: #{tpu_custom_call.1} parent=0
    #allocation3 [shape = 'u8[49152]{0}', space=vmem, size = 0xc000, scoped, tag = 'input window, operand 0, single buffered']
    #allocation4 [shape = 's32[1]{0}', space=sflag, size = 0x4, scoped, tag = 'scoped memory for tpu_custom_call.1']
    #allocation5 [shape = 's32[1]{0}', space=sflag, size = 0x4, scoped, tag = 'scoped memory for tpu_custom_call.1']
    #allocation6 [shape = 'u8[98304]{0}', space=vmem, size = 0x18000, scoped, tag = 'input window, operand 1, single buffered']
    #allocation7 [shape = 's32[1]{0}', space=sflag, size = 0x4, scoped, tag = 'scoped memory for tpu_custom_call.1']
    #allocation8 [shape = 'u8[32768]{0}', space=vmem, size = 0x8000, scoped, tag = 'output window, operand 0, single buffered']
    %8 = vsyncpa [#allocation4], 0
    %9 = vsyncpa [#allocation7], 0
    %10 = vsyncpa [#allocation5], 0
    // Predicated region
    $region2: #{tpu_custom_call.1} parent=1 // pred_check
      _
    $region3: #{tpu_custom_call.1} parent=1 // pred_check_branch
      %12 = sbr.rel (0) target = $region5
    $region4: #{tpu_custom_call.1} parent=1 // pred_region
      %s14 = ssub.s32 1536, 1536
      %15 = vsyncadd [#allocation4], %s14
      %s16 = sshll.u32 [#allocation3], 4
      %s17 = int_to_ptr.vmem [resolvable:$true] %s16
      %22 = dma.hbm_to_vmem [thread:$0]  %s0, 1536, %s17, [#allocation4], 192, 192, 12
    $region5: #{tpu_custom_call.1} parent=1 // pred_fallthru
      _
    // Predicated region
    $region6: #{tpu_custom_call.1} parent=1 // pred_check
      _
    $region7: #{tpu_custom_call.1} parent=1 // pred_check_branch
      %24 = sbr.rel (0) target = $region9
    $region8: #{tpu_custom_call.1} parent=1 // pred_region
      %s26 = ssub.s32 3072, 3072
      %27 = vsyncadd [#allocation7], %s26
      %s28 = sshll.u32 [#allocation6], 4
      %s29 = int_to_ptr.vmem [resolvable:$true] %s28
      %34 = dma.hbm_to_vmem [thread:$0]  %s1, 3072, %s29, [#allocation7], 192, 192, 12
    $region9: #{tpu_custom_call.1} parent=1 // pred_fallthru
      _
    // Predicated region
    $region10: #{tpu_custom_call.1} parent=1 // pred_check
      _
    $region11: #{tpu_custom_call.1} parent=1 // pred_check_branch
      %36 = sbr.rel (0) target = $region13
    $region12: #{tpu_custom_call.1} parent=1 // pred_region
      _
    $region13: #{tpu_custom_call.1} parent=1 // pred_fallthru
      _
    // Predicated region
    $region14: #{tpu_custom_call.1} parent=1 // pred_check
      _
    $region15: #{tpu_custom_call.1} parent=1 // pred_check_branch
      %38 = sbr.rel (0) target = $region17
    $region16: #{tpu_custom_call.1} parent=1 // pred_region
      %39 = dma.done [#allocation4], 1536
    $region17: #{tpu_custom_call.1} parent=1 // pred_fallthru
      _
    // Predicated region
    $region18: #{tpu_custom_call.1} parent=1 // pred_check
      _
    $region19: #{tpu_custom_call.1} parent=1 // pred_check_branch
      %41 = sbr.rel (0) target = $region21
    $region20: #{tpu_custom_call.1} parent=1 // pred_region
      %42 = dma.done [#allocation7], 3072
    $region21: #{tpu_custom_call.1} parent=1 // pred_fallthru
      _
    %p44 = scmp.eq.s32.totalorder 0, 0
    // Predicated region
    $region22: #{tpu_custom_call.1} parent=1 // pred_check
      %p45 = pneg %p44
    $region23: #{tpu_custom_call.1} parent=1 // pred_check_branch
      %47 = sbr.rel (%p45) target = $region25
    $region24: #{tpu_custom_call.1} parent=1 // pred_region
      %48 = vst [vmem:[#allocation2] sm:$0xff] 0.0
    $region25: #{tpu_custom_call.1} parent=1 // pred_fallthru
      _
    %v49 = vld [vmem:[#allocation6] sm:$0xff]
    %v50 = vld [vmem:[#allocation6 + $0x8] sm:$0xf]
    %v51 = vld [vmem:[#allocation6 + $0xc] sm:$0xff]
    %v52 = vld [vmem:[#allocation6 + $0x14] sm:$0xf]
    %v53 = vld [vmem:[#allocation6 + $0x18] sm:$0xff]
    %v54 = vld [vmem:[#allocation6 + $0x20] sm:$0xf]
    %v55 = vld [vmem:[#allocation6 + $0x24] sm:$0xff]
    %v56 = vld [vmem:[#allocation6 + $0x2c] sm:$0xf]
    %v57 = vld [vmem:[#allocation6 + $0x30] sm:$0xff]
    %v58 = vld [vmem:[#allocation6 + $0x38] sm:$0xf]
    %v59 = vld [vmem:[#allocation6 + $0x3c] sm:$0xff]
    %v60 = vld [vmem:[#allocation6 + $0x44] sm:$0xf]
    %v61 = vld [vmem:[#allocation6 + $0x48] sm:$0xff]
    %v62 = vld [vmem:[#allocation6 + $0x50] sm:$0xf]
    %v63 = vld [vmem:[#allocation6 + $0x54] sm:$0xff]
    %v64 = vld [vmem:[#allocation6 + $0x5c] sm:$0xf]
    %v65 = vld [vmem:[#allocation6 + $0x60] sm:$0xff]
    %v66 = vld [vmem:[#allocation6 + $0x68] sm:$0xf]
    %v67 = vld [vmem:[#allocation6 + $0x6c] sm:$0xff]
    %v68 = vld [vmem:[#allocation6 + $0x74] sm:$0xf]
    %v69 = vld [vmem:[#allocation6 + $0x78] sm:$0xff]
    %v70 = vld [vmem:[#allocation6 + $0x80] sm:$0xf]
    %v71 = vld [vmem:[#allocation6 + $0x84] sm:$0xff]
    %v72 = vld [vmem:[#allocation6 + $0x8c] sm:$0xf]
    %v73 = vld [vmem:[#allocation6 + $0x90] sm:$0xff]
    %v74 = vld [vmem:[#allocation6 + $0x98] sm:$0xf]
    %v75 = vld [vmem:[#allocation6 + $0x9c] sm:$0xff]
    %v76 = vld [vmem:[#allocation6 + $0xa4] sm:$0xf]
    %v77 = vld [vmem:[#allocation6 + $0xa8] sm:$0xff]
    %v78 = vld [vmem:[#allocation6 + $0xb0] sm:$0xf]
    %v79 = vld [vmem:[#allocation6 + $0xb4] sm:$0xff]
    %v80 = vld [vmem:[#allocation6 + $0xbc] sm:$0xf]
    %v81 = vld [vmem:[%s2] sm:$0x1]
    %v82 = vld [vmem:[#allocation2] sm:$0xff]
    %v83 = vld [vmem:[#allocation3] sm:$0xff]
    %v84 = vld [vmem:[#allocation3 + $0x8] sm:$0xf]
    %v85 = vunpack.c.l.bf16 %v83
    %v86 = vunpack.c.h.bf16 %v83
    %v87 = vunpack.c.l.bf16 %v84
    %v88 = vpack.c.bf16 %v82, %v82
    %v121 = vunpack.c.l.b16 %v49
    %v122 = vunpack.c.h.b16 %v49
    %v123 = vunpack.c.l.b16 %v50
    %v124 = vunpack.c.l.b16 %v51
    %v125 = vunpack.c.h.b16 %v51
    %v126 = vunpack.c.l.b16 %v52
    %v127 = vunpack.c.l.b16 %v53
    %v128 = vunpack.c.h.b16 %v53
    %v129 = vunpack.c.l.b16 %v54
    %v130 = vunpack.c.l.b16 %v55
    %v131 = vunpack.c.h.b16 %v55
    %v132 = vunpack.c.l.b16 %v56
    %v133 = vunpack.c.l.b16 %v57
    %v134 = vunpack.c.h.b16 %v57
    %v135 = vunpack.c.l.b16 %v58
    %v136 = vunpack.c.l.b16 %v59
    %v137 = vunpack.c.h.b16 %v59
    %v138 = vunpack.c.l.b16 %v60
    %v139 = vunpack.c.l.b16 %v61
    %v140 = vunpack.c.h.b16 %v61
    %v141 = vunpack.c.l.b16 %v62
    %v142 = vunpack.c.l.b16 %v63
    %v143 = vunpack.c.h.b16 %v63
    %v144 = vunpack.c.l.b16 %v64
    %v145 = vunpack.c.l.b16 %v65
    %v146 = vunpack.c.h.b16 %v65
    %v147 = vunpack.c.l.b16 %v66
    %v148 = vunpack.c.l.b16 %v67
    %v149 = vunpack.c.h.b16 %v67
    %v150 = vunpack.c.l.b16 %v68
    %v151 = vunpack.c.l.b16 %v69
    %v152 = vunpack.c.h.b16 %v69
    %v153 = vunpack.c.l.b16 %v70
    %v154 = vunpack.c.l.b16 %v71
    %v155 = vunpack.c.h.b16 %v71
    %v156 = vunpack.c.l.b16 %v72
    %v157 = vunpack.c.l.b16 %v73
    %v158 = vunpack.c.h.b16 %v73
    %v159 = vunpack.c.l.b16 %v74
    %v160 = vunpack.c.l.b16 %v75
    %v161 = vunpack.c.h.b16 %v75
    %v162 = vunpack.c.l.b16 %v76
    %v163 = vunpack.c.l.b16 %v77
    %v164 = vunpack.c.h.b16 %v77
    %v165 = vunpack.c.l.b16 %v78
    %v166 = vunpack.c.l.b16 %v79
    %v167 = vunpack.c.h.b16 %v79
    %v168 = vunpack.c.l.b16 %v80
    %v169 = vpack.c.b16 %v124, %v121
    %v170 = vpack.c.b16 %v125, %v122
    %v171 = vpack.c.b16 %v126, %v123
    %v172 = vpack.c.b16 %v130, %v127
    %v173 = vpack.c.b16 %v131, %v128
    %v174 = vpack.c.b16 %v132, %v129
    %v175 = vpack.c.b16 %v136, %v133
    %v176 = vpack.c.b16 %v137, %v134
    %v177 = vpack.c.b16 %v138, %v135
    %v178 = vpack.c.b16 %v142, %v139
    %v179 = vpack.c.b16 %v143, %v140
    %v180 = vpack.c.b16 %v144, %v141
    %v181 = vpack.c.b16 %v148, %v145
    %v182 = vpack.c.b16 %v149, %v146
    %v183 = vpack.c.b16 %v150, %v147
    %v184 = vpack.c.b16 %v154, %v151
    %v185 = vpack.c.b16 %v155, %v152
    %v186 = vpack.c.b16 %v156, %v153
    %v187 = vpack.c.b16 %v160, %v157
    %v188 = vpack.c.b16 %v161, %v158
    %v189 = vpack.c.b16 %v162, %v159
    %v190 = vpack.c.b16 %v166, %v163
    %v191 = vpack.c.b16 %v167, %v164
    %v192 = vpack.c.b16 %v168, %v165
    %217 = vmatprep.subr.bf16.mxu0 %v170
    %218 = vmatpush1.bf16.msra.mxu0 %v169
    %219 = vmatprep.subr.bf16.mxu0 %v173
    %220 = vmatpush1.bf16.msra.mxu0 %v172
    %221 = vmatprep.subr.bf16.mxu0 %v176
    %222 = vmatpush1.bf16.msra.mxu0 %v175
    %223 = vmatprep.subr.bf16.mxu0 %v179
    %224 = vmatpush1.bf16.msra.mxu0 %v178
    %225 = vmatprep.subr.bf16.mxu0 %v182
    %226 = vmatpush1.bf16.msra.mxu0 %v181
    %227 = vmatprep.subr.bf16.mxu0 %v185
    %228 = vmatpush1.bf16.msra.mxu0 %v184
    %229 = vmatprep.subr.bf16.mxu0 %v188
    %230 = vmatpush1.bf16.msra.mxu0 %v187
    %231 = vmatprep.subr.bf16.mxu0 %v191
    %232 = vmatpush1.bf16.msra.mxu0 %v190
    %233 = vmatprep.subr.bf16.mxu0 0
    %234 = vmatpush1.bf16.msra.mxu0 0
    %235 = vmatprep.subr.bf16.mxu0 0
    %236 = vmatpush1.bf16.msra.mxu0 0
    %237 = vmatprep.subr.bf16.mxu0 0
    %238 = vmatpush1.bf16.msra.mxu0 0
    %239 = vmatprep.subr.bf16.mxu0 0
    %240 = vmatpush1.bf16.msra.mxu0 0
    %241 = vmatprep.subr.bf16.mxu0 0
    %242 = vmatpush1.bf16.msra.mxu0 0
    %243 = vmatprep.subr.bf16.mxu0 0
    %244 = vmatpush1.bf16.msra.mxu0 0
    %245 = vmatprep.subr.bf16.mxu0 0
    %246 = vmatpush1.bf16.msra.mxu0 0
    %247 = vmatprep.subr.bf16.mxu0 0
    %248 = vmatpush1.bf16.msra.mxu0 0
    %249 = vmatprep.mubr.bf16.mxu0 0
    %250 = vmatmul.mubr.bf16.gmra.mrb[0].mxu0 %v88
    %v251 = vpop.f32.mrb[0].mxu0
    %v252 = vadd.f32 0.0, %v251
    %v253 = vpop.f32.mrb[0].mxu0
    %v254 = vadd.f32 0.0, %v253
    %v255 = vpop.f32.mrb[0].mxu0
    %v256 = vpop.f32.mrb[0].mxu0
    %257 = vdwg.mxu0
    %258 = vmatprep.subr.bf16.mxu0 0
    %259 = vmatpush1.bf16.msra.mxu0 %v171
    %260 = vmatprep.subr.bf16.mxu0 0
    %261 = vmatpush1.bf16.msra.mxu0 %v174
    %262 = vmatprep.subr.bf16.mxu0 0
    %263 = vmatpush1.bf16.msra.mxu0 %v177
    %264 = vmatprep.subr.bf16.mxu0 0
    %265 = vmatpush1.bf16.msra.mxu0 %v180
    %266 = vmatprep.subr.bf16.mxu0 0
    %267 = vmatpush1.bf16.msra.mxu0 %v183
    %268 = vmatprep.subr.bf16.mxu0 0
    %269 = vmatpush1.bf16.msra.mxu0 %v186
    %270 = vmatprep.subr.bf16.mxu0 0
    %271 = vmatpush1.bf16.msra.mxu0 %v189
    %272 = vmatprep.subr.bf16.mxu0 0
    %273 = vmatpush1.bf16.msra.mxu0 %v192
    %274 = vmatprep.subr.bf16.mxu0 0
    %275 = vmatpush1.bf16.msra.mxu0 0
    %276 = vmatprep.subr.bf16.mxu0 0
    %277 = vmatpush1.bf16.msra.mxu0 0
    %278 = vmatprep.subr.bf16.mxu0 0
    %279 = vmatpush1.bf16.msra.mxu0 0
    %280 = vmatprep.subr.bf16.mxu0 0
    %281 = vmatpush1.bf16.msra.mxu0 0
    %282 = vmatprep.subr.bf16.mxu0 0
    %283 = vmatpush1.bf16.msra.mxu0 0
    %284 = vmatprep.subr.bf16.mxu0 0
    %285 = vmatpush1.bf16.msra.mxu0 0
    %286 = vmatprep.subr.bf16.mxu0 0
    %287 = vmatpush1.bf16.msra.mxu0 0
    %288 = vmatprep.subr.bf16.mxu0 0
    %289 = vmatpush1.bf16.msra.mxu0 0
    %290 = vmatprep.mubr.bf16.mxu0 0
    %291 = vmatmul.mubr.bf16.gmra.mrb[0].mxu0 %v88
    %v292 = vpop.f32.mrb[0].mxu0
    %v293 = vadd.f32 0.0, %v292
    %v294 = vpop.f32.mrb[0].mxu0
    %v295 = vpop.f32.mrb[0].mxu0
    %v296 = vpop.f32.mrb[0].mxu0
    %297 = vdwg.mxu0
    %v298 = vadd.f32 %v85, %v252
    %v299 = vxor.u32 %v298, 2147483648
    %v300 = vmul.f32 %v299, 1.442695
    %v301 = vpow.pop %v300
    %v302 = vadd.f32 %v301, 1.0
    %v303 = vrcp.pop %v302
    %v304 = vmul.f32 1.0, %v303
    %v305 = vadd.f32 %v86, %v254
    %v306 = vxor.u32 %v305, 2147483648
    %v307 = vmul.f32 %v306, 1.442695
    %v308 = vpow.pop %v307
    %v309 = vadd.f32 %v308, 1.0
    %v310 = vrcp.pop %v309
    %v311 = vmul.f32 1.0, %v310
    %v313 = vlaneseq
    %v314 = vshrl.u32 %v313, 7
    %v315 = vsub.s32 0, %v314
    %v316 = vrot.slane %v81, %v315
    %v318 = vadd.f32 %v293, %v316
    %v319 = vmul.f32 %v304, %v318
    %v320 = vadd.f32 %v87, %v319
    %v321 = vtanh.pop %v320
    %v322 = vsub.f32 1.0, %v311
    %v323 = vmul.f32 %v322, %v321
    %v324 = vmul.f32 %v311, %v82
    %v325 = vadd.f32 %v323, %v324
    %326 = vst [vmem:[#allocation8] sm:$0xff] %v325
    %s327 = scalar_lea.vmem [#allocation3], 12
    %v328 = vld [vmem:[%s327] sm:$0xff]
    %v329 = vld [vmem:[%s327 + $0x8] sm:$0xf]
    %v330 = vunpack.c.l.bf16 %v328
    %v331 = vunpack.c.h.bf16 %v328
    %v332 = vunpack.c.l.bf16 %v329
    %v333 = vpack.c.bf16 %v325, %v325
    %334 = vmatprep.subr.bf16.mxu0 %v170
    %335 = vmatpush1.bf16.msra.mxu0 %v169
    %336 = vmatprep.subr.bf16.mxu0 %v173
    %337 = vmatpush1.bf16.msra.mxu0 %v172
    %338 = vmatprep.subr.bf16.mxu0 %v176
    %339 = vmatpush1.bf16.msra.mxu0 %v175
    %340 = vmatprep.subr.bf16.mxu0 %v179
    %341 = vmatpush1.bf16.msra.mxu0 %v178
    %342 = vmatprep.subr.bf16.mxu0 %v182
    %343 = vmatpush1.bf16.msra.mxu0 %v181
    %344 = vmatprep.subr.bf16.mxu0 %v185
    %345 = vmatpush1.bf16.msra.mxu0 %v184
    %346 = vmatprep.subr.bf16.mxu0 %v188
    %347 = vmatpush1.bf16.msra.mxu0 %v187
    %348 = vmatprep.subr.bf16.mxu0 %v191
    %349 = vmatpush1.bf16.msra.mxu0 %v190
    %350 = vmatprep.subr.bf16.mxu0 0
    %351 = vmatpush1.bf16.msra.mxu0 0
    %352 = vmatprep.subr.bf16.mxu0 0
    %353 = vmatpush1.bf16.msra.mxu0 0
    %354 = vmatprep.subr.bf16.mxu0 0
    %355 = vmatpush1.bf16.msra.mxu0 0
    %356 = vmatprep.subr.bf16.mxu0 0
    %357 = vmatpush1.bf16.msra.mxu0 0
    %358 = vmatprep.subr.bf16.mxu0 0
    %359 = vmatpush1.bf16.msra.mxu0 0
    %360 = vmatprep.subr.bf16.mxu0 0
    %361 = vmatpush1.bf16.msra.mxu0 0
    %362 = vmatprep.subr.bf16.mxu0 0
    %363 = vmatpush1.bf16.msra.mxu0 0
    %364 = vmatprep.subr.bf16.mxu0 0
    %365 = vmatpush1.bf16.msra.mxu0 0
    %366 = vmatprep.mubr.bf16.mxu0 0
    %367 = vmatmul.mubr.bf16.gmra.mrb[0].mxu0 %v333
    %v368 = vpop.f32.mrb[0].mxu0
    %v369 = vadd.f32 0.0, %v368
    %v370 = vpop.f32.mrb[0].mxu0
    %v371 = vadd.f32 0.0, %v370
    %v372 = vpop.f32.mrb[0].mxu0
    %v373 = vpop.f32.mrb[0].mxu0
    %374 = vdwg.mxu0
    %375 = vmatprep.subr.bf16.mxu0 0
    %376 = vmatpush1.bf16.msra.mxu0 %v171
    %377 = vmatprep.subr.bf16.mxu0 0
    %378 = vmatpush1.bf16.msra.mxu0 %v174
    %379 = vmatprep.subr.bf16.mxu0 0
    %380 = vmatpush1.bf16.msra.mxu0 %v177
    %381 = vmatprep.subr.bf16.mxu0 0
    %382 = vmatpush1.bf16.msra.mxu0 %v180
    %383 = vmatprep.subr.bf16.mxu0 0
    %384 = vmatpush1.bf16.msra.mxu0 %v183
    %385 = vmatprep.subr.bf16.mxu0 0
    %386 = vmatpush1.bf16.msra.mxu0 %v186
    %387 = vmatprep.subr.bf16.mxu0 0
    %388 = vmatpush1.bf16.msra.mxu0 %v189
    %389 = vmatprep.subr.bf16.mxu0 0
    %390 = vmatpush1.bf16.msra.mxu0 %v192
    %391 = vmatprep.subr.bf16.mxu0 0
    %392 = vmatpush1.bf16.msra.mxu0 0
    %393 = vmatprep.subr.bf16.mxu0 0
    %394 = vmatpush1.bf16.msra.mxu0 0
    %395 = vmatprep.subr.bf16.mxu0 0
    %396 = vmatpush1.bf16.msra.mxu0 0
    %397 = vmatprep.subr.bf16.mxu0 0
    %398 = vmatpush1.bf16.msra.mxu0 0
    %399 = vmatprep.subr.bf16.mxu0 0
    %400 = vmatpush1.bf16.msra.mxu0 0
    %401 = vmatprep.subr.bf16.mxu0 0
    %402 = vmatpush1.bf16.msra.mxu0 0
    %403 = vmatprep.subr.bf16.mxu0 0
    %404 = vmatpush1.bf16.msra.mxu0 0
    %405 = vmatprep.subr.bf16.mxu0 0
    %406 = vmatpush1.bf16.msra.mxu0 0
    %407 = vmatprep.mubr.bf16.mxu0 0
    %408 = vmatmul.mubr.bf16.gmra.mrb[0].mxu0 %v333
    %v409 = vpop.f32.mrb[0].mxu0
    %v410 = vadd.f32 0.0, %v409
    %v411 = vpop.f32.mrb[0].mxu0
    %v412 = vpop.f32.mrb[0].mxu0
    %v413 = vpop.f32.mrb[0].mxu0
    %414 = vdwg.mxu0
    %v415 = vadd.f32 %v330, %v369
    %v416 = vxor.u32 %v415, 2147483648
    %v417 = vmul.f32 %v416, 1.442695
    %v418 = vpow.pop %v417
    %v419 = vadd.f32 %v418, 1.0
    %v420 = vrcp.pop %v419
    %v421 = vmul.f32 1.0, %v420
    %v422 = vadd.f32 %v331, %v371
    %v423 = vxor.u32 %v422, 2147483648
    %v424 = vmul.f32 %v423, 1.442695
    %v425 = vpow.pop %v424
    %v426 = vadd.f32 %v425, 1.0
    %v427 = vrcp.pop %v426
    %v428 = vmul.f32 1.0, %v427
    %v429 = vadd.f32 %v410, %v316
    %v430 = vmul.f32 %v421, %v429
    %v431 = vadd.f32 %v332, %v430
    %v432 = vtanh.pop %v431
    %v433 = vsub.f32 1.0, %v428
    %v434 = vmul.f32 %v433, %v432
    %v435 = vmul.f32 %v428, %v325
    %v436 = vadd.f32 %v434, %v435
    %s437 = scalar_lea.vmem [#allocation8], 8
    %438 = vst [vmem:[%s437] sm:$0xff] %v436
    %s439 = scalar_lea.vmem [#allocation3], 24
    %v440 = vld [vmem:[%s439] sm:$0xff]
    %v441 = vld [vmem:[%s439 + $0x8] sm:$0xf]
    %v442 = vunpack.c.l.bf16 %v440
    %v443 = vunpack.c.h.bf16 %v440
    %v444 = vunpack.c.l.bf16 %v441
    %v445 = vpack.c.bf16 %v436, %v436
    %446 = vmatprep.subr.bf16.mxu0 %v170
    %447 = vmatpush1.bf16.msra.mxu0 %v169
    %448 = vmatprep.subr.bf16.mxu0 %v173
    %449 = vmatpush1.bf16.msra.mxu0 %v172
    %450 = vmatprep.subr.bf16.mxu0 %v176
    %451 = vmatpush1.bf16.msra.mxu0 %v175
    %452 = vmatprep.subr.bf16.mxu0 %v179
    %453 = vmatpush1.bf16.msra.mxu0 %v178
    %454 = vmatprep.subr.bf16.mxu0 %v182
    %455 = vmatpush1.bf16.msra.mxu0 %v181
    %456 = vmatprep.subr.bf16.mxu0 %v185
    %457 = vmatpush1.bf16.msra.mxu0 %v184
    %458 = vmatprep.subr.bf16.mxu0 %v188
    %459 = vmatpush1.bf16.msra.mxu0 %v187
    %460 = vmatprep.subr.bf16.mxu0 %v191
    %461 = vmatpush1.bf16.msra.mxu0 %v190
    %462 = vmatprep.subr.bf16.mxu0 0
    %463 = vmatpush1.bf16.msra.mxu0 0
    %464 = vmatprep.subr.bf16.mxu0 0
    %465 = vmatpush1.bf16.msra.mxu0 0
    %466 = vmatprep.subr.bf16.mxu0 0
    %467 = vmatpush1.bf16.msra.mxu0 0
    %468 = vmatprep.subr.bf16.mxu0 0
    %469 = vmatpush1.bf16.msra.mxu0 0
    %470 = vmatprep.subr.bf16.mxu0 0
    %471 = vmatpush1.bf16.msra.mxu0 0
    %472 = vmatprep.subr.bf16.mxu0 0
    %473 = vmatpush1.bf16.msra.mxu0 0
    %474 = vmatprep.subr.bf16.mxu0 0
    %475 = vmatpush1.bf16.msra.mxu0 0
    %476 = vmatprep.subr.bf16.mxu0 0
    %477 = vmatpush1.bf16.msra.mxu0 0
    %478 = vmatprep.mubr.bf16.mxu0 0
    %479 = vmatmul.mubr.bf16.gmra.mrb[0].mxu0 %v445
    %v480 = vpop.f32.mrb[0].mxu0
    %v481 = vadd.f32 0.0, %v480
    %v482 = vpop.f32.mrb[0].mxu0
    %v483 = vadd.f32 0.0, %v482
    %v484 = vpop.f32.mrb[0].mxu0
    %v485 = vpop.f32.mrb[0].mxu0
    %486 = vdwg.mxu0
    %487 = vmatprep.subr.bf16.mxu0 0
    %488 = vmatpush1.bf16.msra.mxu0 %v171
    %489 = vmatprep.subr.bf16.mxu0 0
    %490 = vmatpush1.bf16.msra.mxu0 %v174
    %491 = vmatprep.subr.bf16.mxu0 0
    %492 = vmatpush1.bf16.msra.mxu0 %v177
    %493 = vmatprep.subr.bf16.mxu0 0
    %494 = vmatpush1.bf16.msra.mxu0 %v180
    %495 = vmatprep.subr.bf16.mxu0 0
    %496 = vmatpush1.bf16.msra.mxu0 %v183
    %497 = vmatprep.subr.bf16.mxu0 0
    %498 = vmatpush1.bf16.msra.mxu0 %v186
    %499 = vmatprep.subr.bf16.mxu0 0
    %500 = vmatpush1.bf16.msra.mxu0 %v189
    %501 = vmatprep.subr.bf16.mxu0 0
    %502 = vmatpush1.bf16.msra.mxu0 %v192
    %503 = vmatprep.subr.bf16.mxu0 0
    %504 = vmatpush1.bf16.msra.mxu0 0
    %505 = vmatprep.subr.bf16.mxu0 0
    %506 = vmatpush1.bf16.msra.mxu0 0
    %507 = vmatprep.subr.bf16.mxu0 0
    %508 = vmatpush1.bf16.msra.mxu0 0
    %509 = vmatprep.subr.bf16.mxu0 0
    %510 = vmatpush1.bf16.msra.mxu0 0
    %511 = vmatprep.subr.bf16.mxu0 0
    %512 = vmatpush1.bf16.msra.mxu0 0
    %513 = vmatprep.subr.bf16.mxu0 0
    %514 = vmatpush1.bf16.msra.mxu0 0
    %515 = vmatprep.subr.bf16.mxu0 0
    %516 = vmatpush1.bf16.msra.mxu0 0
    %517 = vmatprep.subr.bf16.mxu0 0
    %518 = vmatpush1.bf16.msra.mxu0 0
    %519 = vmatprep.mubr.bf16.mxu0 0
    %520 = vmatmul.mubr.bf16.gmra.mrb[0].mxu0 %v445
    %v521 = vpop.f32.mrb[0].mxu0
    %v522 = vadd.f32 0.0, %v521
    %v523 = vpop.f32.mrb[0].mxu0
    %v524 = vpop.f32.mrb[0].mxu0
    %v525 = vpop.f32.mrb[0].mxu0
    %526 = vdwg.mxu0
    %v527 = vadd.f32 %v442, %v481
    %v528 = vxor.u32 %v527, 2147483648
    %v529 = vmul.f32 %v528, 1.442695
    %v530 = vpow.pop %v529
    %v531 = vadd.f32 %v530, 1.0
    %v532 = vrcp.pop %v531
    %v533 = vmul.f32 1.0, %v532
    %v534 = vadd.f32 %v443, %v483
    %v535 = vxor.u32 %v534, 2147483648
    %v536 = vmul.f32 %v535, 1.442695
    %v537 = vpow.pop %v536
    %v538 = vadd.f32 %v537, 1.0
    %v539 = vrcp.pop %v538
    %v540 = vmul.f32 1.0, %v539
    %v541 = vadd.f32 %v522, %v316
    %v542 = vmul.f32 %v533, %v541
    %v543 = vadd.f32 %v444, %v542
    %v544 = vtanh.pop %v543
    %v545 = vsub.f32 1.0, %v540
    %v546 = vmul.f32 %v545, %v544
    %v547 = vmul.f32 %v540, %v436
    %v548 = vadd.f32 %v546, %v547
    %s549 = scalar_lea.vmem [#allocation8], 16
    %550 = vst [vmem:[%s549] sm:$0xff] %v548
    %s551 = scalar_lea.vmem [#allocation3], 36
    %v552 = vld [vmem:[%s551] sm:$0xff]
    %v553 = vld [vmem:[%s551 + $0x8] sm:$0xf]
    %v554 = vunpack.c.l.bf16 %v552
    %v555 = vunpack.c.h.bf16 %v552
    %v556 = vunpack.c.l.bf16 %v553
    %v557 = vpack.c.bf16 %v548, %v548
    %558 = vmatprep.subr.bf16.mxu0 %v170
    %559 = vmatpush1.bf16.msra.mxu0 %v169
    %560 = vmatprep.subr.bf16.mxu0 %v173
    %561 = vmatpush1.bf16.msra.mxu0 %v172
    %562 = vmatprep.subr.bf16.mxu0 %v176
    %563 = vmatpush1.bf16.msra.mxu0 %v175
    %564 = vmatprep.subr.bf16.mxu0 %v179
    %565 = vmatpush1.bf16.msra.mxu0 %v178
    %566 = vmatprep.subr.bf16.mxu0 %v182
    %567 = vmatpush1.bf16.msra.mxu0 %v181
    %568 = vmatprep.subr.bf16.mxu0 %v185
    %569 = vmatpush1.bf16.msra.mxu0 %v184
    %570 = vmatprep.subr.bf16.mxu0 %v188
    %571 = vmatpush1.bf16.msra.mxu0 %v187
    %572 = vmatprep.subr.bf16.mxu0 %v191
    %573 = vmatpush1.bf16.msra.mxu0 %v190
    %574 = vmatprep.subr.bf16.mxu0 0
    %575 = vmatpush1.bf16.msra.mxu0 0
    %576 = vmatprep.subr.bf16.mxu0 0
    %577 = vmatpush1.bf16.msra.mxu0 0
    %578 = vmatprep.subr.bf16.mxu0 0
    %579 = vmatpush1.bf16.msra.mxu0 0
    %580 = vmatprep.subr.bf16.mxu0 0
    %581 = vmatpush1.bf16.msra.mxu0 0
    %582 = vmatprep.subr.bf16.mxu0 0
    %583 = vmatpush1.bf16.msra.mxu0 0
    %584 = vmatprep.subr.bf16.mxu0 0
    %585 = vmatpush1.bf16.msra.mxu0 0
    %586 = vmatprep.subr.bf16.mxu0 0
    %587 = vmatpush1.bf16.msra.mxu0 0
    %588 = vmatprep.subr.bf16.mxu0 0
    %589 = vmatpush1.bf16.msra.mxu0 0
    %590 = vmatprep.mubr.bf16.mxu0 0
    %591 = vmatmul.mubr.bf16.gmra.mrb[0].mxu0 %v557
    %v592 = vpop.f32.mrb[0].mxu0
    %v593 = vadd.f32 0.0, %v592
    %v594 = vpop.f32.mrb[0].mxu0
    %v595 = vadd.f32 0.0, %v594
    %v596 = vpop.f32.mrb[0].mxu0
    %v597 = vpop.f32.mrb[0].mxu0
    %598 = vdwg.mxu0
    %599 = vmatprep.subr.bf16.mxu0 0
    %600 = vmatpush1.bf16.msra.mxu0 %v171
    %601 = vmatprep.subr.bf16.mxu0 0
    %602 = vmatpush1.bf16.msra.mxu0 %v174
    %603 = vmatprep.subr.bf16.mxu0 0
    %604 = vmatpush1.bf16.msra.mxu0 %v177
    %605 = vmatprep.subr.bf16.mxu0 0
    %606 = vmatpush1.bf16.msra.mxu0 %v180
    %607 = vmatprep.subr.bf16.mxu0 0
    %608 = vmatpush1.bf16.msra.mxu0 %v183
    %609 = vmatprep.subr.bf16.mxu0 0
    %610 = vmatpush1.bf16.msra.mxu0 %v186
    %611 = vmatprep.subr.bf16.mxu0 0
    %612 = vmatpush1.bf16.msra.mxu0 %v189
    %613 = vmatprep.subr.bf16.mxu0 0
    %614 = vmatpush1.bf16.msra.mxu0 %v192
    %615 = vmatprep.subr.bf16.mxu0 0
    %616 = vmatpush1.bf16.msra.mxu0 0
    %617 = vmatprep.subr.bf16.mxu0 0
    %618 = vmatpush1.bf16.msra.mxu0 0
    %619 = vmatprep.subr.bf16.mxu0 0
    %620 = vmatpush1.bf16.msra.mxu0 0
    %621 = vmatprep.subr.bf16.mxu0 0
    %622 = vmatpush1.bf16.msra.mxu0 0
    %623 = vmatprep.subr.bf16.mxu0 0
    %624 = vmatpush1.bf16.msra.mxu0 0
    %625 = vmatprep.subr.bf16.mxu0 0
    %626 = vmatpush1.bf16.msra.mxu0 0
    %627 = vmatprep.subr.bf16.mxu0 0
    %628 = vmatpush1.bf16.msra.mxu0 0
    %629 = vmatprep.subr.bf16.mxu0 0
    %630 = vmatpush1.bf16.msra.mxu0 0
    %631 = vmatprep.mubr.bf16.mxu0 0
    %632 = vmatmul.mubr.bf16.gmra.mrb[0].mxu0 %v557
    %v633 = vpop.f32.mrb[0].mxu0
    %v634 = vadd.f32 0.0, %v633
    %v635 = vpop.f32.mrb[0].mxu0
    %v636 = vpop.f32.mrb[0].mxu0
    %v637 = vpop.f32.mrb[0].mxu0
    %638 = vdwg.mxu0
    %v639 = vadd.f32 %v554, %v593
    %v640 = vxor.u32 %v639, 2147483648
    %v641 = vmul.f32 %v640, 1.442695
    %v642 = vpow.pop %v641
    %v643 = vadd.f32 %v642, 1.0
    %v644 = vrcp.pop %v643
    %v645 = vmul.f32 1.0, %v644
    %v646 = vadd.f32 %v555, %v595
    %v647 = vxor.u32 %v646, 2147483648
    %v648 = vmul.f32 %v647, 1.442695
    %v649 = vpow.pop %v648
    %v650 = vadd.f32 %v649, 1.0
    %v651 = vrcp.pop %v650
    %v652 = vmul.f32 1.0, %v651
    %v653 = vadd.f32 %v634, %v316
    %v654 = vmul.f32 %v645, %v653
    %v655 = vadd.f32 %v556, %v654
    %v656 = vtanh.pop %v655
    %v657 = vsub.f32 1.0, %v652
    %v658 = vmul.f32 %v657, %v656
    %v659 = vmul.f32 %v652, %v548
    %v660 = vadd.f32 %v658, %v659
    %s661 = scalar_lea.vmem [#allocation8], 24
    %662 = vst [vmem:[%s661] sm:$0xff] %v660
    %s663 = scalar_lea.vmem [#allocation3], 48
    %v664 = vld [vmem:[%s663] sm:$0xff]
    %v665 = vld [vmem:[%s663 + $0x8] sm:$0xf]
    %v666 = vunpack.c.l.bf16 %v664
    %v667 = vunpack.c.h.bf16 %v664
    %v668 = vunpack.c.l.bf16 %v665
    %v669 = vpack.c.bf16 %v660, %v660
    %670 = vmatprep.subr.bf16.mxu0 %v170
    %671 = vmatpush1.bf16.msra.mxu0 %v169
    %672 = vmatprep.subr.bf16.mxu0 %v173
    %673 = vmatpush1.bf16.msra.mxu0 %v172
    %674 = vmatprep.subr.bf16.mxu0 %v176
    %675 = vmatpush1.bf16.msra.mxu0 %v175
    %676 = vmatprep.subr.bf16.mxu0 %v179
    %677 = vmatpush1.bf16.msra.mxu0 %v178
    %678 = vmatprep.subr.bf16.mxu0 %v182
    %679 = vmatpush1.bf16.msra.mxu0 %v181
    %680 = vmatprep.subr.bf16.mxu0 %v185
    %681 = vmatpush1.bf16.msra.mxu0 %v184
    %682 = vmatprep.subr.bf16.mxu0 %v188
    %683 = vmatpush1.bf16.msra.mxu0 %v187
    %684 = vmatprep.subr.bf16.mxu0 %v191
    %685 = vmatpush1.bf16.msra.mxu0 %v190
    %686 = vmatprep.subr.bf16.mxu0 0
    %687 = vmatpush1.bf16.msra.mxu0 0
    %688 = vmatprep.subr.bf16.mxu0 0
    %689 = vmatpush1.bf16.msra.mxu0 0
    %690 = vmatprep.subr.bf16.mxu0 0
    %691 = vmatpush1.bf16.msra.mxu0 0
    %692 = vmatprep.subr.bf16.mxu0 0
    %693 = vmatpush1.bf16.msra.mxu0 0
    %694 = vmatprep.subr.bf16.mxu0 0
    %695 = vmatpush1.bf16.msra.mxu0 0
    %696 = vmatprep.subr.bf16.mxu0 0
    %697 = vmatpush1.bf16.msra.mxu0 0
    %698 = vmatprep.subr.bf16.mxu0 0
    %699 = vmatpush1.bf16.msra.mxu0 0
    %700 = vmatprep.subr.bf16.mxu0 0
    %701 = vmatpush1.bf16.msra.mxu0 0
    %702 = vmatprep.mubr.bf16.mxu0 0
    %703 = vmatmul.mubr.bf16.gmra.mrb[0].mxu0 %v669
    %v704 = vpop.f32.mrb[0].mxu0
    %v705 = vadd.f32 0.0, %v704
    %v706 = vpop.f32.mrb[0].mxu0
    %v707 = vadd.f32 0.0, %v706
    %v708 = vpop.f32.mrb[0].mxu0
    %v709 = vpop.f32.mrb[0].mxu0
    %710 = vdwg.mxu0
    %711 = vmatprep.subr.bf16.mxu0 0
    %712 = vmatpush1.bf16.msra.mxu0 %v171
    %713 = vmatprep.subr.bf16.mxu0 0
    %714 = vmatpush1.bf16.msra.mxu0 %v174
    %715 = vmatprep.subr.bf16.mxu0 0
    %716 = vmatpush1.bf16.msra.mxu0 %v177
    %717 = vmatprep.subr.bf16.mxu0 0
    %718 = vmatpush1.bf16.msra.mxu0 %v180
    %719 = vmatprep.subr.bf16.mxu0 0
    %720 = vmatpush1.bf16.msra.mxu0 %v183
    %721 = vmatprep.subr.bf16.mxu0 0
    %722 = vmatpush1.bf16.msra.mxu0 %v186
    %723 = vmatprep.subr.bf16.mxu0 0
    %724 = vmatpush1.bf16.msra.mxu0 %v189
    %725 = vmatprep.subr.bf16.mxu0 0
    %726 = vmatpush1.bf16.msra.mxu0 %v192
    %727 = vmatprep.subr.bf16.mxu0 0
    %728 = vmatpush1.bf16.msra.mxu0 0
    %729 = vmatprep.subr.bf16.mxu0 0
    %730 = vmatpush1.bf16.msra.mxu0 0
    %731 = vmatprep.subr.bf16.mxu0 0
    %732 = vmatpush1.bf16.msra.mxu0 0
    %733 = vmatprep.subr.bf16.mxu0 0
    %734 = vmatpush1.bf16.msra.mxu0 0
    %735 = vmatprep.subr.bf16.mxu0 0
    %736 = vmatpush1.bf16.msra.mxu0 0
    %737 = vmatprep.subr.bf16.mxu0 0
    %738 = vmatpush1.bf16.msra.mxu0 0
    %739 = vmatprep.subr.bf16.mxu0 0
    %740 = vmatpush1.bf16.msra.mxu0 0
    %741 = vmatprep.subr.bf16.mxu0 0
    %742 = vmatpush1.bf16.msra.mxu0 0
    %743 = vmatprep.mubr.bf16.mxu0 0
    %744 = vmatmul.mubr.bf16.gmra.mrb[0].mxu0 %v669
    %v745 = vpop.f32.mrb[0].mxu0
    %v746 = vadd.f32 0.0, %v745
    %v747 = vpop.f32.mrb[0].mxu0
    %v748 = vpop.f32.mrb[0].mxu0
    %v749 = vpop.f32.mrb[0].mxu0
    %750 = vdwg.mxu0
    %v751 = vadd.f32 %v666, %v705
    %v752 = vxor.u32 %v751, 2147483648
    %v753 = vmul.f32 %v752, 1.442695
    %v754 = vpow.pop %v753
    %v755 = vadd.f32 %v754, 1.0
    %v756 = vrcp.pop %v755
    %v757 = vmul.f32 1.0, %v756
    %v758 = vadd.f32 %v667, %v707
    %v759 = vxor.u32 %v758, 2147483648
    %v760 = vmul.f32 %v759, 1.442695
    %v761 = vpow.pop %v760
    %v762 = vadd.f32 %v761, 1.0
    %v763 = vrcp.pop %v762
    %v764 = vmul.f32 1.0, %v763
    %v765 = vadd.f32 %v746, %v316
    %v766 = vmul.f32 %v757, %v765
    %v767 = vadd.f32 %v668, %v766
    %v768 = vtanh.pop %v767
    %v769 = vsub.f32 1.0, %v764
    %v770 = vmul.f32 %v769, %v768
    %v771 = vmul.f32 %v764, %v660
    %v772 = vadd.f32 %v770, %v771
    %s773 = scalar_lea.vmem [#allocation8], 32
    %774 = vst [vmem:[%s773] sm:$0xff] %v772
    %s775 = scalar_lea.vmem [#allocation3], 60
    %v776 = vld [vmem:[%s775] sm:$0xff]
    %v777 = vld [vmem:[%s775 + $0x8] sm:$0xf]
    %v778 = vunpack.c.l.bf16 %v776
    %v779 = vunpack.c.h.bf16 %v776
    %v780 = vunpack.c.l.bf16 %v777
    %v781 = vpack.c.bf16 %v772, %v772
    %782 = vmatprep.subr.bf16.mxu0 %v170
    %783 = vmatpush1.bf16.msra.mxu0 %v169
    %784 = vmatprep.subr.bf16.mxu0 %v173
    %785 = vmatpush1.bf16.msra.mxu0 %v172
    %786 = vmatprep.subr.bf16.mxu0 %v176
    %787 = vmatpush1.bf16.msra.mxu0 %v175
    %788 = vmatprep.subr.bf16.mxu0 %v179
    %789 = vmatpush1.bf16.msra.mxu0 %v178
    %790 = vmatprep.subr.bf16.mxu0 %v182
    %791 = vmatpush1.bf16.msra.mxu0 %v181
    %792 = vmatprep.subr.bf16.mxu0 %v185
    %793 = vmatpush1.bf16.msra.mxu0 %v184
    %794 = vmatprep.subr.bf16.mxu0 %v188
    %795 = vmatpush1.bf16.msra.mxu0 %v187
    %796 = vmatprep.subr.bf16.mxu0 %v191
    %797 = vmatpush1.bf16.msra.mxu0 %v190
    %798 = vmatprep.subr.bf16.mxu0 0
    %799 = vmatpush1.bf16.msra.mxu0 0
    %800 = vmatprep.subr.bf16.mxu0 0
    %801 = vmatpush1.bf16.msra.mxu0 0
    %802 = vmatprep.subr.bf16.mxu0 0
    %803 = vmatpush1.bf16.msra.mxu0 0
    %804 = vmatprep.subr.bf16.mxu0 0
    %805 = vmatpush1.bf16.msra.mxu0 0
    %806 = vmatprep.subr.bf16.mxu0 0
    %807 = vmatpush1.bf16.msra.mxu0 0
    %808 = vmatprep.subr.bf16.mxu0 0
    %809 = vmatpush1.bf16.msra.mxu0 0
    %810 = vmatprep.subr.bf16.mxu0 0
    %811 = vmatpush1.bf16.msra.mxu0 0
    %812 = vmatprep.subr.bf16.mxu0 0
    %813 = vmatpush1.bf16.msra.mxu0 0
    %814 = vmatprep.mubr.bf16.mxu0 0
    %815 = vmatmul.mubr.bf16.gmra.mrb[0].mxu0 %v781
    %v816 = vpop.f32.mrb[0].mxu0
    %v817 = vadd.f32 0.0, %v816
    %v818 = vpop.f32.mrb[0].mxu0
    %v819 = vadd.f32 0.0, %v818
    %v820 = vpop.f32.mrb[0].mxu0
    %v821 = vpop.f32.mrb[0].mxu0
    %822 = vdwg.mxu0
    %823 = vmatprep.subr.bf16.mxu0 0
    %824 = vmatpush1.bf16.msra.mxu0 %v171
    %825 = vmatprep.subr.bf16.mxu0 0
    %826 = vmatpush1.bf16.msra.mxu0 %v174
    %827 = vmatprep.subr.bf16.mxu0 0
    %828 = vmatpush1.bf16.msra.mxu0 %v177
    %829 = vmatprep.subr.bf16.mxu0 0
    %830 = vmatpush1.bf16.msra.mxu0 %v180
    %831 = vmatprep.subr.bf16.mxu0 0
    %832 = vmatpush1.bf16.msra.mxu0 %v183
    %833 = vmatprep.subr.bf16.mxu0 0
    %834 = vmatpush1.bf16.msra.mxu0 %v186
    %835 = vmatprep.subr.bf16.mxu0 0
    %836 = vmatpush1.bf16.msra.mxu0 %v189
    %837 = vmatprep.subr.bf16.mxu0 0
    %838 = vmatpush1.bf16.msra.mxu0 %v192
    %839 = vmatprep.subr.bf16.mxu0 0
    %840 = vmatpush1.bf16.msra.mxu0 0
    %841 = vmatprep.subr.bf16.mxu0 0
    %842 = vmatpush1.bf16.msra.mxu0 0
    %843 = vmatprep.subr.bf16.mxu0 0
    %844 = vmatpush1.bf16.msra.mxu0 0
    %845 = vmatprep.subr.bf16.mxu0 0
    %846 = vmatpush1.bf16.msra.mxu0 0
    %847 = vmatprep.subr.bf16.mxu0 0
    %848 = vmatpush1.bf16.msra.mxu0 0
    %849 = vmatprep.subr.bf16.mxu0 0
    %850 = vmatpush1.bf16.msra.mxu0 0
    %851 = vmatprep.subr.bf16.mxu0 0
    %852 = vmatpush1.bf16.msra.mxu0 0
    %853 = vmatprep.subr.bf16.mxu0 0
    %854 = vmatpush1.bf16.msra.mxu0 0
    %855 = vmatprep.mubr.bf16.mxu0 0
    %856 = vmatmul.mubr.bf16.gmra.mrb[0].mxu0 %v781
    %v857 = vpop.f32.mrb[0].mxu0
    %v858 = vadd.f32 0.0, %v857
    %v859 = vpop.f32.mrb[0].mxu0
    %v860 = vpop.f32.mrb[0].mxu0
    %v861 = vpop.f32.mrb[0].mxu0
    %862 = vdwg.mxu0
    %v863 = vadd.f32 %v778, %v817
    %v864 = vxor.u32 %v863, 2147483648
    %v865 = vmul.f32 %v864, 1.442695
    %v866 = vpow.pop %v865
    %v867 = vadd.f32 %v866, 1.0
    %v868 = vrcp.pop %v867
    %v869 = vmul.f32 1.0, %v868
    %v870 = vadd.f32 %v779, %v819
    %v871 = vxor.u32 %v870, 2147483648
    %v872 = vmul.f32 %v871, 1.442695
    %v873 = vpow.pop %v872
    %v874 = vadd.f32 %v873, 1.0
    %v875 = vrcp.pop %v874
    %v876 = vmul.f32 1.0, %v875
    %v877 = vadd.f32 %v858, %v316
    %v878 = vmul.f32 %v869, %v877
    %v879 = vadd.f32 %v780, %v878
    %v880 = vtanh.pop %v879
    %v881 = vsub.f32 1.0, %v876
    %v882 = vmul.f32 %v881, %v880
    %v883 = vmul.f32 %v876, %v772
    %v884 = vadd.f32 %v882, %v883
    %s885 = scalar_lea.vmem [#allocation8], 40
    %886 = vst [vmem:[%s885] sm:$0xff] %v884
    %s887 = scalar_lea.vmem [#allocation3], 72
    %v888 = vld [vmem:[%s887] sm:$0xff]
    %v889 = vld [vmem:[%s887 + $0x8] sm:$0xf]
    %v890 = vunpack.c.l.bf16 %v888
    %v891 = vunpack.c.h.bf16 %v888
    %v892 = vunpack.c.l.bf16 %v889
    %v893 = vpack.c.bf16 %v884, %v884
    %894 = vmatprep.subr.bf16.mxu0 %v170
    %895 = vmatpush1.bf16.msra.mxu0 %v169
    %896 = vmatprep.subr.bf16.mxu0 %v173
    %897 = vmatpush1.bf16.msra.mxu0 %v172
    %898 = vmatprep.subr.bf16.mxu0 %v176
    %899 = vmatpush1.bf16.msra.mxu0 %v175
    %900 = vmatprep.subr.bf16.mxu0 %v179
    %901 = vmatpush1.bf16.msra.mxu0 %v178
    %902 = vmatprep.subr.bf16.mxu0 %v182
    %903 = vmatpush1.bf16.msra.mxu0 %v181
    %904 = vmatprep.subr.bf16.mxu0 %v185
    %905 = vmatpush1.bf16.msra.mxu0 %v184
    %906 = vmatprep.subr.bf16.mxu0 %v188
    %907 = vmatpush1.bf16.msra.mxu0 %v187
    %908 = vmatprep.subr.bf16.mxu0 %v191
    %909 = vmatpush1.bf16.msra.mxu0 %v190
    %910 = vmatprep.subr.bf16.mxu0 0
    %911 = vmatpush1.bf16.msra.mxu0 0
    %912 = vmatprep.subr.bf16.mxu0 0
    %913 = vmatpush1.bf16.msra.mxu0 0
    %914 = vmatprep.subr.bf16.mxu0 0
    %915 = vmatpush1.bf16.msra.mxu0 0
    %916 = vmatprep.subr.bf16.mxu0 0
    %917 = vmatpush1.bf16.msra.mxu0 0
    %918 = vmatprep.subr.bf16.mxu0 0
    %919 = vmatpush1.bf16.msra.mxu0 0
    %920 = vmatprep.subr.bf16.mxu0 0
    %921 = vmatpush1.bf16.msra.mxu0 0
    %922 = vmatprep.subr.bf16.mxu0 0
    %923 = vmatpush1.bf16.msra.mxu0 0
    %924 = vmatprep.subr.bf16.mxu0 0
    %925 = vmatpush1.bf16.msra.mxu0 0
    %926 = vmatprep.mubr.bf16.mxu0 0
    %927 = vmatmul.mubr.bf16.gmra.mrb[0].mxu0 %v893
    %v928 = vpop.f32.mrb[0].mxu0
    %v929 = vadd.f32 0.0, %v928
    %v930 = vpop.f32.mrb[0].mxu0
    %v931 = vadd.f32 0.0, %v930
    %v932 = vpop.f32.mrb[0].mxu0
    %v933 = vpop.f32.mrb[0].mxu0
    %934 = vdwg.mxu0
    %935 = vmatprep.subr.bf16.mxu0 0
    %936 = vmatpush1.bf16.msra.mxu0 %v171
    %937 = vmatprep.subr.bf16.mxu0 0
    %938 = vmatpush1.bf16.msra.mxu0 %v174
    %939 = vmatprep.subr.bf16.mxu0 0
    %940 = vmatpush1.bf16.msra.mxu0 %v177
    %941 = vmatprep.subr.bf16.mxu0 0
    %942 = vmatpush1.bf16.msra.mxu0 %v180
    %943 = vmatprep.subr.bf16.mxu0 0
    %944 = vmatpush1.bf16.msra.mxu0 %v183
    %945 = vmatprep.subr.bf16.mxu0 0
    %946 = vmatpush1.bf16.msra.mxu0 %v186
    %947 = vmatprep.subr.bf16.mxu0 0
    %948 = vmatpush1.bf16.msra.mxu0 %v189
    %949 = vmatprep.subr.bf16.mxu0 0
    %950 = vmatpush1.bf16.msra.mxu0 %v192
    %951 = vmatprep.subr.bf16.mxu0 0
    %952 = vmatpush1.bf16.msra.mxu0 0
    %953 = vmatprep.subr.bf16.mxu0 0
    %954 = vmatpush1.bf16.msra.mxu0 0
    %955 = vmatprep.subr.bf16.mxu0 0
    %956 = vmatpush1.bf16.msra.mxu0 0
    %957 = vmatprep.subr.bf16.mxu0 0
    %958 = vmatpush1.bf16.msra.mxu0 0
    %959 = vmatprep.subr.bf16.mxu0 0
    %960 = vmatpush1.bf16.msra.mxu0 0
    %961 = vmatprep.subr.bf16.mxu0 0
    %962 = vmatpush1.bf16.msra.mxu0 0
    %963 = vmatprep.subr.bf16.mxu0 0
    %964 = vmatpush1.bf16.msra.mxu0 0
    %965 = vmatprep.subr.bf16.mxu0 0
    %966 = vmatpush1.bf16.msra.mxu0 0
    %967 = vmatprep.mubr.bf16.mxu0 0
    %968 = vmatmul.mubr.bf16.gmra.mrb[0].mxu0 %v893
    %v969 = vpop.f32.mrb[0].mxu0
    %v970 = vadd.f32 0.0, %v969
    %v971 = vpop.f32.mrb[0].mxu0
    %v972 = vpop.f32.mrb[0].mxu0
    %v973 = vpop.f32.mrb[0].mxu0
    %974 = vdwg.mxu0
    %v975 = vadd.f32 %v890, %v929
    %v976 = vxor.u32 %v975, 2147483648
    %v977 = vmul.f32 %v976, 1.442695
    %v978 = vpow.pop %v977
    %v979 = vadd.f32 %v978, 1.0
    %v980 = vrcp.pop %v979
    %v981 = vmul.f32 1.0, %v980
    %v982 = vadd.f32 %v891, %v931
    %v983 = vxor.u32 %v982, 2147483648
    %v984 = vmul.f32 %v983, 1.442695
    %v985 = vpow.pop %v984
    %v986 = vadd.f32 %v985, 1.0
    %v987 = vrcp.pop %v986
    %v988 = vmul.f32 1.0, %v987
    %v989 = vadd.f32 %v970, %v316
    %v990 = vmul.f32 %v981, %v989
    %v991 = vadd.f32 %v892, %v990
    %v992 = vtanh.pop %v991
    %v993 = vsub.f32 1.0, %v988
    %v994 = vmul.f32 %v993, %v992
    %v995 = vmul.f32 %v988, %v884
    %v996 = vadd.f32 %v994, %v995
    %s997 = scalar_lea.vmem [#allocation8], 48
    %998 = vst [vmem:[%s997] sm:$0xff] %v996
    %s999 = scalar_lea.vmem [#allocation3], 84
    %v1000 = vld [vmem:[%s999] sm:$0xff]
    %v1001 = vld [vmem:[%s999 + $0x8] sm:$0xf]
    %v1002 = vunpack.c.l.bf16 %v1000
    %v1003 = vunpack.c.h.bf16 %v1000
    %v1004 = vunpack.c.l.bf16 %v1001
    %v1005 = vpack.c.bf16 %v996, %v996
    %1006 = vmatprep.subr.bf16.mxu0 %v170
    %1007 = vmatpush1.bf16.msra.mxu0 %v169
    %1008 = vmatprep.subr.bf16.mxu0 %v173
    %1009 = vmatpush1.bf16.msra.mxu0 %v172
    %1010 = vmatprep.subr.bf16.mxu0 %v176
    %1011 = vmatpush1.bf16.msra.mxu0 %v175
    %1012 = vmatprep.subr.bf16.mxu0 %v179
    %1013 = vmatpush1.bf16.msra.mxu0 %v178
    %1014 = vmatprep.subr.bf16.mxu0 %v182
    %1015 = vmatpush1.bf16.msra.mxu0 %v181
    %1016 = vmatprep.subr.bf16.mxu0 %v185
    %1017 = vmatpush1.bf16.msra.mxu0 %v184
    %1018 = vmatprep.subr.bf16.mxu0 %v188
    %1019 = vmatpush1.bf16.msra.mxu0 %v187
    %1020 = vmatprep.subr.bf16.mxu0 %v191
    %1021 = vmatpush1.bf16.msra.mxu0 %v190
    %1022 = vmatprep.subr.bf16.mxu0 0
    %1023 = vmatpush1.bf16.msra.mxu0 0
    %1024 = vmatprep.subr.bf16.mxu0 0
    %1025 = vmatpush1.bf16.msra.mxu0 0
    %1026 = vmatprep.subr.bf16.mxu0 0
    %1027 = vmatpush1.bf16.msra.mxu0 0
    %1028 = vmatprep.subr.bf16.mxu0 0
    %1029 = vmatpush1.bf16.msra.mxu0 0
    %1030 = vmatprep.subr.bf16.mxu0 0
    %1031 = vmatpush1.bf16.msra.mxu0 0
    %1032 = vmatprep.subr.bf16.mxu0 0
    %1033 = vmatpush1.bf16.msra.mxu0 0
    %1034 = vmatprep.subr.bf16.mxu0 0
    %1035 = vmatpush1.bf16.msra.mxu0 0
    %1036 = vmatprep.subr.bf16.mxu0 0
    %1037 = vmatpush1.bf16.msra.mxu0 0
    %1038 = vmatprep.mubr.bf16.mxu0 0
    %1039 = vmatmul.mubr.bf16.gmra.mrb[0].mxu0 %v1005
    %v1040 = vpop.f32.mrb[0].mxu0
    %v1041 = vadd.f32 0.0, %v1040
    %v1042 = vpop.f32.mrb[0].mxu0
    %v1043 = vadd.f32 0.0, %v1042
    %v1044 = vpop.f32.mrb[0].mxu0
    %v1045 = vpop.f32.mrb[0].mxu0
    %1046 = vdwg.mxu0
    %1047 = vmatprep.subr.bf16.mxu0 0
    %1048 = vmatpush1.bf16.msra.mxu0 %v171
    %1049 = vmatprep.subr.bf16.mxu0 0
    %1050 = vmatpush1.bf16.msra.mxu0 %v174
    %1051 = vmatprep.subr.bf16.mxu0 0
    %1052 = vmatpush1.bf16.msra.mxu0 %v177
    %1053 = vmatprep.subr.bf16.mxu0 0
    %1054 = vmatpush1.bf16.msra.mxu0 %v180
    %1055 = vmatprep.subr.bf16.mxu0 0
    %1056 = vmatpush1.bf16.msra.mxu0 %v183
    %1057 = vmatprep.subr.bf16.mxu0 0
    %1058 = vmatpush1.bf16.msra.mxu0 %v186
    %1059 = vmatprep.subr.bf16.mxu0 0
    %1060 = vmatpush1.bf16.msra.mxu0 %v189
    %1061 = vmatprep.subr.bf16.mxu0 0
    %1062 = vmatpush1.bf16.msra.mxu0 %v192
    %1063 = vmatprep.subr.bf16.mxu0 0
    %1064 = vmatpush1.bf16.msra.mxu0 0
    %1065 = vmatprep.subr.bf16.mxu0 0
    %1066 = vmatpush1.bf16.msra.mxu0 0
    %1067 = vmatprep.subr.bf16.mxu0 0
    %1068 = vmatpush1.bf16.msra.mxu0 0
    %1069 = vmatprep.subr.bf16.mxu0 0
    %1070 = vmatpush1.bf16.msra.mxu0 0
    %1071 = vmatprep.subr.bf16.mxu0 0
    %1072 = vmatpush1.bf16.msra.mxu0 0
    %1073 = vmatprep.subr.bf16.mxu0 0
    %1074 = vmatpush1.bf16.msra.mxu0 0
    %1075 = vmatprep.subr.bf16.mxu0 0
    %1076 = vmatpush1.bf16.msra.mxu0 0
    %1077 = vmatprep.subr.bf16.mxu0 0
    %1078 = vmatpush1.bf16.msra.mxu0 0
    %1079 = vmatprep.mubr.bf16.mxu0 0
    %1080 = vmatmul.mubr.bf16.gmra.mrb[0].mxu0 %v1005
    %v1081 = vpop.f32.mrb[0].mxu0
    %v1082 = vadd.f32 0.0, %v1081
    %v1083 = vpop.f32.mrb[0].mxu0
    %v1084 = vpop.f32.mrb[0].mxu0
    %v1085 = vpop.f32.mrb[0].mxu0
    %1086 = vdwg.mxu0
    %v1087 = vadd.f32 %v1002, %v1041
    %v1088 = vxor.u32 %v1087, 2147483648
    %v1089 = vmul.f32 %v1088, 1.442695
    %v1090 = vpow.pop %v1089
    %v1091 = vadd.f32 %v1090, 1.0
    %v1092 = vrcp.pop %v1091
    %v1093 = vmul.f32 1.0, %v1092
    %v1094 = vadd.f32 %v1003, %v1043
    %v1095 = vxor.u32 %v1094, 2147483648
    %v1096 = vmul.f32 %v1095, 1.442695
    %v1097 = vpow.pop %v1096
    %v1098 = vadd.f32 %v1097, 1.0
    %v1099 = vrcp.pop %v1098
    %v1100 = vmul.f32 1.0, %v1099
    %v1101 = vadd.f32 %v1082, %v316
    %v1102 = vmul.f32 %v1093, %v1101
    %v1103 = vadd.f32 %v1004, %v1102
    %v1104 = vtanh.pop %v1103
    %v1105 = vsub.f32 1.0, %v1100
    %v1106 = vmul.f32 %v1105, %v1104
    %v1107 = vmul.f32 %v1100, %v996
    %v1108 = vadd.f32 %v1106, %v1107
    %s1109 = scalar_lea.vmem [#allocation8], 56
    %1110 = vst [vmem:[%s1109] sm:$0xff] %v1108
    %1111 = vst [vmem:[#allocation2] sm:$0xff] %v1108
    // Predicated region
    $region26: #{tpu_custom_call.1} parent=1 // pred_check
      _
    $region27: #{tpu_custom_call.1} parent=1 // pred_check_branch
      %1113 = sbr.rel (0) target = $region29
    $region28: #{tpu_custom_call.1} parent=1 // pred_region
      %s1115 = ssub.s32 1024, 1024
      %1116 = vsyncadd [#allocation5], %s1115
      %s1117 = sshll.u32 [#allocation8], 4
      %s1118 = int_to_ptr.vmem [resolvable:$true] %s1117
      %1123 = dma.vmem_to_hbm [thread:$0]  %s1118, 1024, %s3, [#allocation5], 128, 128, 8
    $region29: #{tpu_custom_call.1} parent=1 // pred_fallthru
      _
    // Predicated region
    $region30: #{tpu_custom_call.1} parent=1 // pred_check
      _
    $region31: #{tpu_custom_call.1} parent=1 // pred_check_branch
      %1125 = sbr.rel (0) target = $region33
    $region32: #{tpu_custom_call.1} parent=1 // pred_region
      %1126 = dma.done [#allocation5], 1024
    $region33: #{tpu_custom_call.1} parent=1 // pred_fallthru
      _
    %1127 = vsyncpa [#allocation4], 1
    %1128 = vsyncpa [#allocation7], 1
    %1129 = vsyncpa [#allocation5], 1

</llo_original>
